<compile_context>
chip_gen: v7x
topology: tpu7x:2x2x1
jax: 0.10.0
libtpu: 0.0.40
codegen_flags: <defaults>
</compile_context>

<pallas_src>
import functools

import jax
import jax.numpy as jnp
import numpy as np
from jax.experimental import pallas as pl
from jax.experimental.pallas import tpu as pltpu


def crf_loss_kernel(em_ref, tags_ref, mask_ref, start_ref, trans_ref, end_ref,
                    out_ref, *, seq_len):
    """One batch tile of the CRF log-likelihood sum.

    Shapes inside the kernel (TB = batch tile on lanes):
      em_ref    : (S, T, TB) f32
      tags_ref  : (S, 1, TB) i32
      mask_ref  : (S, 1, TB) f32
      start_ref : (T, 1)     f32
      trans_ref : (T, T, 1)  f32   (prev_tag, cur_tag, 1)
      end_ref   : (T, 1)     f32
      out_ref   : (1, 1)     f32 SMEM — partial sum(likelihood) for this tile
    """
    S, T, TB = em_ref.shape

    start = start_ref[...]          # (T, 1)
    end = end_ref[...]              # (T, 1)
    trans3 = trans_ref[...]         # (T_prev, T_cur, 1) — hoisted once, reused every step

    tag_iota = jax.lax.broadcasted_iota(jnp.int32, (T, TB), 0)

    def onehot(tag_row):            # (1, TB) i32 -> (T, TB) f32
        return (tag_iota == tag_row).astype(jnp.float32)

    # ---------------- step 0 ----------------
    em0 = em_ref[0]                 # (T, TB)
    mask0 = mask_ref[0]             # (1, TB)
    oh0 = onehot(tags_ref[0])       # (T, TB)

    # Per-tag path-score contributions; reduced over the tag axis only once at the end
    # (keeps the whole accumulation lane-dense / pure VPU).
    score_acc0 = oh0 * (start + em0 * mask0)       # start_trans[tags0] + emissions0[tags0]*mask0
    log_prob0 = start + em0                        # forward variable, (T_cur, TB)

    def body(i, carry):
        score_acc, log_prob, oh_prev = carry
        em_i = em_ref[i]            # per-step ref load bounds live ranges
        m_i = mask_ref[i]           # (1, TB)
        oh_cur = onehot(tags_ref[i])

        # ---- path score: emission + transition, both masked ----
        # transitions[pre_tag, cur_tag] via pure-VPU one-hot gather (no tiny MXU matmuls)
        trans_row = jnp.sum(trans3 * oh_prev[:, None, :], axis=0)      # (T_cur, TB)
        score_acc = score_acc + oh_cur * (em_i + trans_row) * m_i

        # ---- log-partition forward recurrence (logsumexp over previous tag) ----
        # TODO(synk): for large num_tag, switch to the exp-matmul form
        #   log_prob = em + m + log(exp(trans).T @ exp(log_prob - m))
        # to move the TxT contraction onto the MXU; at T=5 the VPU path below is cheaper
        # and matches the reference numerics exactly.
        sc3 = log_prob[:, None, :] + em_i[None, :, :] + trans3         # (T_prev, T_cur, TB)
        mx = jnp.max(sc3, axis=0)                                      # (T_cur, TB)
        lse = mx + jnp.log(jnp.sum(jnp.exp(sc3 - mx[None, :, :]), axis=0))
        log_prob = lse * m_i + log_prob * (1.0 - m_i)
        return score_acc, log_prob, oh_cur

    score_acc, log_prob, _ = jax.lax.fori_loop(
        1, seq_len, body, (score_acc0, log_prob0, oh0),
        unroll=(seq_len <= 32))

    # ---------------- end transitions via the last unmasked tag ----------------
    tags_all = tags_ref[...][:, 0, :]                                  # (S, TB)
    mask_all = mask_ref[...][:, 0, :]                                  # (S, TB)
    lengths = jnp.sum(mask_all, axis=0).astype(jnp.int32) - 1          # (TB,); -1 for all-pad column
    time_iota = jax.lax.broadcasted_iota(jnp.int32, (S, TB), 0)
    last_sel = (time_iota == lengths[None, :]).astype(jnp.int32)       # (S, TB)
    last_tag = jnp.sum(last_sel * tags_all, axis=0)                    # (TB,); all-pad -> 0 (same as ref)
    score_acc = score_acc + onehot(last_tag[None, :]) * end

    path_score = jnp.sum(score_acc, axis=0)                            # (TB,) — single sublane reduce

    # ---------------- finalize partition ----------------
    log_prob = log_prob + end
    mx = jnp.max(log_prob, axis=0)                                     # (TB,)
    log_z = mx + jnp.log(jnp.sum(jnp.exp(log_prob - mx[None, :]), axis=0))

    out_ref[0, 0] = jnp.sum(path_score - log_z)                        # likelihood.sum() for this tile


def _pick_batch_tile(batch):
    # Lane-dense batch tiling: the last (lane) block dim must be a multiple of 128
    # or equal the full batch.  Target <=512-wide tiles (v7x has only 64 MiB VMEM,
    # v5e/v6e could take more; 512 keeps double-buffered inputs inside the scoped
    # default everywhere for typical S*T).
    if batch % 128 != 0:
        return batch
    tb = 128
    while tb * 2 <= 512 and batch % (tb * 2) == 0:
        tb *= 2
    return tb


def crf1_forward(emissions, tags, mask, start_transitions, transitions, end_transitions):
    S, B, T = emissions.shape
    # Faithful to the original size-unpack bug: seq_len = emissions.shape[1] (== batch).
    seq_len = B
    if seq_len > S:
        raise ValueError(
            "CRF1 quirk: loop bound is emissions.shape[1] (batch) but indexing is along "
            "dim 0 (time); shape[1] > shape[0] would index out of bounds.")

    tb = _pick_batch_tile(B)
    nb = B // tb

    # Layout plumbing in the wrapper: batch goes to the lane (last) axis.
    em_t = jnp.transpose(emissions.astype(jnp.float32), (0, 2, 1))     # (S, T, B)
    tags3 = tags.astype(jnp.int32).reshape(S, 1, B)
    mask3 = mask.astype(jnp.float32).reshape(S, 1, B)
    start2 = start_transitions.astype(jnp.float32).reshape(T, 1)
    trans3 = transitions.astype(jnp.float32).reshape(T, T, 1)
    end2 = end_transitions.astype(jnp.float32).reshape(T, 1)

    kernel = functools.partial(crf_loss_kernel, seq_len=seq_len)

    partial_sums = pl.pallas_call(
        kernel,
        out_shape=jax.ShapeDtypeStruct((nb, 1), jnp.float32),
        grid=(nb,),
        in_specs=[
            pl.BlockSpec((S, T, tb), lambda b: (0, 0, b)),
            pl.BlockSpec((S, 1, tb), lambda b: (0, 0, b)),
            pl.BlockSpec((S, 1, tb), lambda b: (0, 0, b)),
            pl.BlockSpec((T, 1), lambda b: (0, 0)),
            pl.BlockSpec((T, T, 1), lambda b: (0, 0, 0)),
            pl.BlockSpec((T, 1), lambda b: (0, 0)),
        ],
        out_specs=pl.BlockSpec((1, 1), lambda b: (b, 0),
                               memory_space=pltpu.MemorySpace.SMEM),
        compiler_params=pltpu.CompilerParams(
            dimension_semantics=("parallel",)),
    )(em_t, tags3, mask3, start2, trans3, end2)

    return jnp.sum(partial_sums)


def crf1_forward_ref(emissions, tags, mask, start, trans, end):
    """Pure-JAX reference with identical semantics, for validation."""
    S, B, T = emissions.shape
    seq_len = B
    maskf = mask.astype(jnp.float32)
    scores = start[tags[0]]
    scores = scores + jnp.take_along_axis(emissions[0], tags[0][:, None], axis=1)[:, 0] * maskf[0]
    for i in range(1, seq_len):
        pre, cur = tags[i - 1], tags[i]
        scores = scores + jnp.take_along_axis(emissions[i], cur[:, None], axis=1)[:, 0] * maskf[i]
        scores = scores + trans[pre, cur] * maskf[i]
    last_idx = maskf.astype(jnp.int32).sum(0) - 1
    last_tag = tags[last_idx, jnp.arange(B)]
    scores = scores + end[last_tag]

    log_prob = start[None, :] + emissions[0]
    for ii in range(1, seq_len):
        sc = log_prob[:, :, None] + emissions[ii][:, None, :] + trans[None, :, :]
        lse = jax.nn.logsumexp(sc, axis=1)
        m = maskf[ii][:, None]
        log_prob = lse * m + log_prob * (1.0 - m)
    log_prob = log_prob + end[None, :]
    log_z = jax.nn.logsumexp(log_prob, axis=1)
    return jnp.sum(scores - log_z)


# TODO(synk): CRF1.decode/_viterbi (data-dependent Python backtracking over variable
# sequence ends) is not part of forward() and is left unimplemented.

if __name__ == "__main__":
    S, B, T = 8, 8, 5  # seq, batch, num_tag (S == B so the original size-unpack quirk is consistent)
    key = jax.random.PRNGKey(0)
    k_em, k_tag, k_s, k_t, k_e = jax.random.split(key, 5)

    emissions = jax.random.normal(k_em, (S, B, T), dtype=jnp.float32)
    tags = jax.random.randint(k_tag, (S, B), 0, T, dtype=jnp.int32)
    lengths = jnp.array([8, 6, 8, 5, 7, 8, 3, 8], dtype=jnp.int32)
    mask = (jnp.arange(S)[:, None] < lengths[None, :]).astype(jnp.float32)

    # deterministic parameter init, matching nn.init.uniform_(-0.1, 0.1) shapes
    start_transitions = jax.random.uniform(k_s, (T,), minval=-0.1, maxval=0.1, dtype=jnp.float32)
    transitions = jax.random.uniform(k_t, (T, T), minval=-0.1, maxval=0.1, dtype=jnp.float32)
    end_transitions = jax.random.uniform(k_e, (T,), minval=-0.1, maxval=0.1, dtype=jnp.float32)

    out = crf1_forward(emissions, tags, mask, start_transitions, transitions, end_transitions)
    out = jax.block_until_ready(out)

    ref = crf1_forward_ref(emissions, tags, mask, start_transitions, transitions, end_transitions)
    np.testing.assert_allclose(np.asarray(out), np.asarray(ref), rtol=1e-4, atol=1e-4)
    print("KERNEL_OK")
</pallas_src>

<mosaic_0001>
module attributes {stable_mosaic.version = 11 : i64} {
  func.func @crf_loss_kernel(%arg0: i32, %arg1: memref<8x5x8xf32, #tpu.memory_space<vmem>>, %arg2: memref<8x1x8xi32, #tpu.memory_space<vmem>>, %arg3: memref<8x1x8xf32, #tpu.memory_space<vmem>>, %arg4: memref<5x1xf32, #tpu.memory_space<vmem>>, %arg5: memref<5x5x1xf32, #tpu.memory_space<vmem>>, %arg6: memref<5x1xf32, #tpu.memory_space<vmem>>, %arg7: memref<1x1xf32, #tpu.memory_space<smem>>) attributes {dimension_semantics = [#tpu.dimension_semantics<parallel>], iteration_bounds = array<i64: 1>, scalar_prefetch = 0 : i64, scratch_operands = 0 : i64, tpu.core_type = #tpu.core_type<tc>, window_params = [{transform_indices = @transform_0, window_bounds = array<i64: 8, 5, 8>}, {transform_indices = @transform_1, window_bounds = array<i64: 8, 1, 8>}, {transform_indices = @transform_2, window_bounds = array<i64: 8, 1, 8>}, {pipeline_mode = #tpu.pipeline_mode<synchronous>, transform_indices = @transform_3, window_bounds = array<i64: 5, 1>}, {pipeline_mode = #tpu.pipeline_mode<synchronous>, transform_indices = @transform_4, window_bounds = array<i64: 5, 5, 1>}, {pipeline_mode = #tpu.pipeline_mode<synchronous>, transform_indices = @transform_5, window_bounds = array<i64: 5, 1>}, {transform_indices = @transform_6, window_bounds = array<i64: 1, 1>}]} {
    %c0 = arith.constant 0 : index
    %c0_0 = arith.constant 0 : index
    %0 = vector.load %arg4[%c0, %c0_0] : memref<5x1xf32, #tpu.memory_space<vmem>>, vector<5x1xf32>
    %c0_1 = arith.constant 0 : index
    %c0_2 = arith.constant 0 : index
    %1 = vector.load %arg6[%c0_1, %c0_2] : memref<5x1xf32, #tpu.memory_space<vmem>>, vector<5x1xf32>
    %c0_3 = arith.constant 0 : index
    %c0_4 = arith.constant 0 : index
    %c0_5 = arith.constant 0 : index
    %2 = vector.load %arg5[%c0_3, %c0_4, %c0_5] : memref<5x5x1xf32, #tpu.memory_space<vmem>>, vector<5x5x1xf32>
    %3 = tpu.iota {dimensions = array<i32: 0>} : vector<5x8xi32>
    %c0_6 = arith.constant 0 : index
    %c0_7 = arith.constant 0 : index
    %c0_8 = arith.constant 0 : index
    %4 = vector.load %arg1[%c0_6, %c0_7, %c0_8] : memref<8x5x8xf32, #tpu.memory_space<vmem>>, vector<1x5x8xf32>
    %5 = vector.shape_cast %4 : vector<1x5x8xf32> to vector<5x8xf32>
    %c0_9 = arith.constant 0 : index
    %c0_10 = arith.constant 0 : index
    %c0_11 = arith.constant 0 : index
    %6 = vector.load %arg3[%c0_9, %c0_10, %c0_11] : memref<8x1x8xf32, #tpu.memory_space<vmem>>, vector<1x1x8xf32>
    %7 = vector.shape_cast %6 : vector<1x1x8xf32> to vector<1x8xf32>
    %c0_12 = arith.constant 0 : index
    %c0_13 = arith.constant 0 : index
    %c0_14 = arith.constant 0 : index
    %8 = vector.load %arg2[%c0_12, %c0_13, %c0_14] : memref<8x1x8xi32, #tpu.memory_space<vmem>>, vector<1x1x8xi32>
    %9 = vector.shape_cast %8 : vector<1x1x8xi32> to vector<1x8xi32>
    %10 = vector.broadcast %9 : vector<1x8xi32> to vector<5x8xi32>
    %11 = arith.cmpi eq, %3, %10 : vector<5x8xi32>
    %12 = arith.extui %11 : vector<5x8xi1> to vector<5x8xi32>
    %13 = arith.sitofp %12 : vector<5x8xi32> to vector<5x8xf32>
    %14 = vector.broadcast %7 : vector<1x8xf32> to vector<5x8xf32>
    %15 = arith.mulf %5, %14 : vector<5x8xf32>
    %16 = vector.broadcast %0 : vector<5x1xf32> to vector<5x8xf32>
    %17 = arith.addf %16, %15 : vector<5x8xf32>
    %18 = arith.mulf %13, %17 : vector<5x8xf32>
    %19 = vector.broadcast %0 : vector<5x1xf32> to vector<5x8xf32>
    %20 = arith.addf %19, %5 : vector<5x8xf32>
    %c1_i32 = arith.constant 1 : i32
    %21 = arith.index_cast %c1_i32 : i32 to index
    %c0_15 = arith.constant 0 : index
    %c0_16 = arith.constant 0 : index
    %22 = vector.load %arg1[%21, %c0_15, %c0_16] : memref<8x5x8xf32, #tpu.memory_space<vmem>>, vector<1x5x8xf32>
    %23 = vector.shape_cast %22 : vector<1x5x8xf32> to vector<5x8xf32>
    %24 = arith.index_cast %c1_i32 : i32 to index
    %c0_17 = arith.constant 0 : index
    %c0_18 = arith.constant 0 : index
    %25 = vector.load %arg3[%24, %c0_17, %c0_18] : memref<8x1x8xf32, #tpu.memory_space<vmem>>, vector<1x1x8xf32>
    %26 = vector.shape_cast %25 : vector<1x1x8xf32> to vector<1x8xf32>
    %27 = arith.index_cast %c1_i32 : i32 to index
    %c0_19 = arith.constant 0 : index
    %c0_20 = arith.constant 0 : index
    %28 = vector.load %arg2[%27, %c0_19, %c0_20] : memref<8x1x8xi32, #tpu.memory_space<vmem>>, vector<1x1x8xi32>
    %29 = vector.shape_cast %28 : vector<1x1x8xi32> to vector<1x8xi32>
    %30 = vector.broadcast %29 : vector<1x8xi32> to vector<5x8xi32>
    %31 = arith.cmpi eq, %3, %30 : vector<5x8xi32>
    %32 = arith.extui %31 : vector<5x8xi1> to vector<5x8xi32>
    %33 = arith.sitofp %32 : vector<5x8xi32> to vector<5x8xf32>
    %34 = vector.shape_cast %13 : vector<5x8xf32> to vector<5x1x8xf32>
    %35 = vector.broadcast %2 : vector<5x5x1xf32> to vector<5x5x8xf32>
    %36 = vector.broadcast %34 : vector<5x1x8xf32> to vector<5x5x8xf32>
    %37 = arith.mulf %35, %36 : vector<5x5x8xf32>
    %cst = arith.constant dense<0.000000e+00> : vector<5x8xf32>
    %38 = vector.multi_reduction <add>, %37, %cst [0] : vector<5x5x8xf32> to vector<5x8xf32>
    %39 = arith.addf %23, %38 : vector<5x8xf32>
    %40 = arith.mulf %33, %39 : vector<5x8xf32>
    %41 = vector.broadcast %26 : vector<1x8xf32> to vector<5x8xf32>
    %42 = arith.mulf %40, %41 : vector<5x8xf32>
    %43 = arith.addf %18, %42 : vector<5x8xf32>
    %44 = vector.shape_cast %20 : vector<5x8xf32> to vector<5x1x8xf32>
    %45 = vector.shape_cast %23 : vector<5x8xf32> to vector<1x5x8xf32>
    %46 = vector.broadcast %44 : vector<5x1x8xf32> to vector<5x5x8xf32>
    %47 = vector.broadcast %45 : vector<1x5x8xf32> to vector<5x5x8xf32>
    %48 = arith.addf %46, %47 : vector<5x5x8xf32>
    %49 = vector.broadcast %2 : vector<5x5x1xf32> to vector<5x5x8xf32>
    %50 = arith.addf %48, %49 : vector<5x5x8xf32>
    %cst_21 = arith.constant dense<0xFF800000> : vector<5x8xf32>
    %51 = vector.multi_reduction <maximumf>, %50, %cst_21 [0] : vector<5x5x8xf32> to vector<5x8xf32>
    %52 = vector.shape_cast %51 : vector<5x8xf32> to vector<1x5x8xf32>
    %53 = vector.broadcast %52 : vector<1x5x8xf32> to vector<5x5x8xf32>
    %54 = arith.subf %50, %53 : vector<5x5x8xf32>
    %55 = math.exp %54 : vector<5x5x8xf32>
    %cst_22 = arith.constant dense<0.000000e+00> : vector<5x8xf32>
    %56 = vector.multi_reduction <add>, %55, %cst_22 [0] : vector<5x5x8xf32> to vector<5x8xf32>
    %57 = math.log %56 : vector<5x8xf32>
    %58 = arith.addf %51, %57 : vector<5x8xf32>
    %59 = vector.broadcast %26 : vector<1x8xf32> to vector<5x8xf32>
    %60 = arith.mulf %58, %59 : vector<5x8xf32>
    %cst_23 = arith.constant 1.000000e+00 : f32
    %61 = vector.broadcast %cst_23 : f32 to vector<1x8xf32>
    %62 = arith.subf %61, %26 : vector<1x8xf32>
    %63 = vector.broadcast %62 : vector<1x8xf32> to vector<5x8xf32>
    %64 = arith.mulf %20, %63 : vector<5x8xf32>
    %65 = arith.addf %60, %64 : vector<5x8xf32>
    %c2_i32 = arith.constant 2 : i32
    %66 = arith.index_cast %c2_i32 : i32 to index
    %c0_24 = arith.constant 0 : index
    %c0_25 = arith.constant 0 : index
    %67 = vector.load %arg1[%66, %c0_24, %c0_25] : memref<8x5x8xf32, #tpu.memory_space<vmem>>, vector<1x5x8xf32>
    %68 = vector.shape_cast %67 : vector<1x5x8xf32> to vector<5x8xf32>
    %69 = arith.index_cast %c2_i32 : i32 to index
    %c0_26 = arith.constant 0 : index
    %c0_27 = arith.constant 0 : index
    %70 = vector.load %arg3[%69, %c0_26, %c0_27] : memref<8x1x8xf32, #tpu.memory_space<vmem>>, vector<1x1x8xf32>
    %71 = vector.shape_cast %70 : vector<1x1x8xf32> to vector<1x8xf32>
    %72 = arith.index_cast %c2_i32 : i32 to index
    %c0_28 = arith.constant 0 : index
    %c0_29 = arith.constant 0 : index
    %73 = vector.load %arg2[%72, %c0_28, %c0_29] : memref<8x1x8xi32, #tpu.memory_space<vmem>>, vector<1x1x8xi32>
    %74 = vector.shape_cast %73 : vector<1x1x8xi32> to vector<1x8xi32>
    %75 = vector.broadcast %74 : vector<1x8xi32> to vector<5x8xi32>
    %76 = arith.cmpi eq, %3, %75 : vector<5x8xi32>
    %77 = arith.extui %76 : vector<5x8xi1> to vector<5x8xi32>
    %78 = arith.sitofp %77 : vector<5x8xi32> to vector<5x8xf32>
    %79 = vector.shape_cast %33 : vector<5x8xf32> to vector<5x1x8xf32>
    %80 = vector.broadcast %2 : vector<5x5x1xf32> to vector<5x5x8xf32>
    %81 = vector.broadcast %79 : vector<5x1x8xf32> to vector<5x5x8xf32>
    %82 = arith.mulf %80, %81 : vector<5x5x8xf32>
    %cst_30 = arith.constant dense<0.000000e+00> : vector<5x8xf32>
    %83 = vector.multi_reduction <add>, %82, %cst_30 [0] : vector<5x5x8xf32> to vector<5x8xf32>
    %84 = arith.addf %68, %83 : vector<5x8xf32>
    %85 = arith.mulf %78, %84 : vector<5x8xf32>
    %86 = vector.broadcast %71 : vector<1x8xf32> to vector<5x8xf32>
    %87 = arith.mulf %85, %86 : vector<5x8xf32>
    %88 = arith.addf %43, %87 : vector<5x8xf32>
    %89 = vector.shape_cast %65 : vector<5x8xf32> to vector<5x1x8xf32>
    %90 = vector.shape_cast %68 : vector<5x8xf32> to vector<1x5x8xf32>
    %91 = vector.broadcast %89 : vector<5x1x8xf32> to vector<5x5x8xf32>
    %92 = vector.broadcast %90 : vector<1x5x8xf32> to vector<5x5x8xf32>
    %93 = arith.addf %91, %92 : vector<5x5x8xf32>
    %94 = vector.broadcast %2 : vector<5x5x1xf32> to vector<5x5x8xf32>
    %95 = arith.addf %93, %94 : vector<5x5x8xf32>
    %cst_31 = arith.constant dense<0xFF800000> : vector<5x8xf32>
    %96 = vector.multi_reduction <maximumf>, %95, %cst_31 [0] : vector<5x5x8xf32> to vector<5x8xf32>
    %97 = vector.shape_cast %96 : vector<5x8xf32> to vector<1x5x8xf32>
    %98 = vector.broadcast %97 : vector<1x5x8xf32> to vector<5x5x8xf32>
    %99 = arith.subf %95, %98 : vector<5x5x8xf32>
    %100 = math.exp %99 : vector<5x5x8xf32>
    %cst_32 = arith.constant dense<0.000000e+00> : vector<5x8xf32>
    %101 = vector.multi_reduction <add>, %100, %cst_32 [0] : vector<5x5x8xf32> to vector<5x8xf32>
    %102 = math.log %101 : vector<5x8xf32>
    %103 = arith.addf %96, %102 : vector<5x8xf32>
    %104 = vector.broadcast %71 : vector<1x8xf32> to vector<5x8xf32>
    %105 = arith.mulf %103, %104 : vector<5x8xf32>
    %cst_33 = arith.constant 1.000000e+00 : f32
    %106 = vector.broadcast %cst_33 : f32 to vector<1x8xf32>
    %107 = arith.subf %106, %71 : vector<1x8xf32>
    %108 = vector.broadcast %107 : vector<1x8xf32> to vector<5x8xf32>
    %109 = arith.mulf %65, %108 : vector<5x8xf32>
    %110 = arith.addf %105, %109 : vector<5x8xf32>
    %c3_i32 = arith.constant 3 : i32
    %111 = arith.index_cast %c3_i32 : i32 to index
    %c0_34 = arith.constant 0 : index
    %c0_35 = arith.constant 0 : index
    %112 = vector.load %arg1[%111, %c0_34, %c0_35] : memref<8x5x8xf32, #tpu.memory_space<vmem>>, vector<1x5x8xf32>
    %113 = vector.shape_cast %112 : vector<1x5x8xf32> to vector<5x8xf32>
    %114 = arith.index_cast %c3_i32 : i32 to index
    %c0_36 = arith.constant 0 : index
    %c0_37 = arith.constant 0 : index
    %115 = vector.load %arg3[%114, %c0_36, %c0_37] : memref<8x1x8xf32, #tpu.memory_space<vmem>>, vector<1x1x8xf32>
    %116 = vector.shape_cast %115 : vector<1x1x8xf32> to vector<1x8xf32>
    %117 = arith.index_cast %c3_i32 : i32 to index
    %c0_38 = arith.constant 0 : index
    %c0_39 = arith.constant 0 : index
    %118 = vector.load %arg2[%117, %c0_38, %c0_39] : memref<8x1x8xi32, #tpu.memory_space<vmem>>, vector<1x1x8xi32>
    %119 = vector.shape_cast %118 : vector<1x1x8xi32> to vector<1x8xi32>
    %120 = vector.broadcast %119 : vector<1x8xi32> to vector<5x8xi32>
    %121 = arith.cmpi eq, %3, %120 : vector<5x8xi32>
    %122 = arith.extui %121 : vector<5x8xi1> to vector<5x8xi32>
    %123 = arith.sitofp %122 : vector<5x8xi32> to vector<5x8xf32>
    %124 = vector.shape_cast %78 : vector<5x8xf32> to vector<5x1x8xf32>
    %125 = vector.broadcast %2 : vector<5x5x1xf32> to vector<5x5x8xf32>
    %126 = vector.broadcast %124 : vector<5x1x8xf32> to vector<5x5x8xf32>
    %127 = arith.mulf %125, %126 : vector<5x5x8xf32>
    %cst_40 = arith.constant dense<0.000000e+00> : vector<5x8xf32>
    %128 = vector.multi_reduction <add>, %127, %cst_40 [0] : vector<5x5x8xf32> to vector<5x8xf32>
    %129 = arith.addf %113, %128 : vector<5x8xf32>
    %130 = arith.mulf %123, %129 : vector<5x8xf32>
    %131 = vector.broadcast %116 : vector<1x8xf32> to vector<5x8xf32>
    %132 = arith.mulf %130, %131 : vector<5x8xf32>
    %133 = arith.addf %88, %132 : vector<5x8xf32>
    %134 = vector.shape_cast %110 : vector<5x8xf32> to vector<5x1x8xf32>
    %135 = vector.shape_cast %113 : vector<5x8xf32> to vector<1x5x8xf32>
    %136 = vector.broadcast %134 : vector<5x1x8xf32> to vector<5x5x8xf32>
    %137 = vector.broadcast %135 : vector<1x5x8xf32> to vector<5x5x8xf32>
    %138 = arith.addf %136, %137 : vector<5x5x8xf32>
    %139 = vector.broadcast %2 : vector<5x5x1xf32> to vector<5x5x8xf32>
    %140 = arith.addf %138, %139 : vector<5x5x8xf32>
    %cst_41 = arith.constant dense<0xFF800000> : vector<5x8xf32>
    %141 = vector.multi_reduction <maximumf>, %140, %cst_41 [0] : vector<5x5x8xf32> to vector<5x8xf32>
    %142 = vector.shape_cast %141 : vector<5x8xf32> to vector<1x5x8xf32>
    %143 = vector.broadcast %142 : vector<1x5x8xf32> to vector<5x5x8xf32>
    %144 = arith.subf %140, %143 : vector<5x5x8xf32>
    %145 = math.exp %144 : vector<5x5x8xf32>
    %cst_42 = arith.constant dense<0.000000e+00> : vector<5x8xf32>
    %146 = vector.multi_reduction <add>, %145, %cst_42 [0] : vector<5x5x8xf32> to vector<5x8xf32>
    %147 = math.log %146 : vector<5x8xf32>
    %148 = arith.addf %141, %147 : vector<5x8xf32>
    %149 = vector.broadcast %116 : vector<1x8xf32> to vector<5x8xf32>
    %150 = arith.mulf %148, %149 : vector<5x8xf32>
    %cst_43 = arith.constant 1.000000e+00 : f32
    %151 = vector.broadcast %cst_43 : f32 to vector<1x8xf32>
    %152 = arith.subf %151, %116 : vector<1x8xf32>
    %153 = vector.broadcast %152 : vector<1x8xf32> to vector<5x8xf32>
    %154 = arith.mulf %110, %153 : vector<5x8xf32>
    %155 = arith.addf %150, %154 : vector<5x8xf32>
    %c4_i32 = arith.constant 4 : i32
    %156 = arith.index_cast %c4_i32 : i32 to index
    %c0_44 = arith.constant 0 : index
    %c0_45 = arith.constant 0 : index
    %157 = vector.load %arg1[%156, %c0_44, %c0_45] : memref<8x5x8xf32, #tpu.memory_space<vmem>>, vector<1x5x8xf32>
    %158 = vector.shape_cast %157 : vector<1x5x8xf32> to vector<5x8xf32>
    %159 = arith.index_cast %c4_i32 : i32 to index
    %c0_46 = arith.constant 0 : index
    %c0_47 = arith.constant 0 : index
    %160 = vector.load %arg3[%159, %c0_46, %c0_47] : memref<8x1x8xf32, #tpu.memory_space<vmem>>, vector<1x1x8xf32>
    %161 = vector.shape_cast %160 : vector<1x1x8xf32> to vector<1x8xf32>
    %162 = arith.index_cast %c4_i32 : i32 to index
    %c0_48 = arith.constant 0 : index
    %c0_49 = arith.constant 0 : index
    %163 = vector.load %arg2[%162, %c0_48, %c0_49] : memref<8x1x8xi32, #tpu.memory_space<vmem>>, vector<1x1x8xi32>
    %164 = vector.shape_cast %163 : vector<1x1x8xi32> to vector<1x8xi32>
    %165 = vector.broadcast %164 : vector<1x8xi32> to vector<5x8xi32>
    %166 = arith.cmpi eq, %3, %165 : vector<5x8xi32>
    %167 = arith.extui %166 : vector<5x8xi1> to vector<5x8xi32>
    %168 = arith.sitofp %167 : vector<5x8xi32> to vector<5x8xf32>
    %169 = vector.shape_cast %123 : vector<5x8xf32> to vector<5x1x8xf32>
    %170 = vector.broadcast %2 : vector<5x5x1xf32> to vector<5x5x8xf32>
    %171 = vector.broadcast %169 : vector<5x1x8xf32> to vector<5x5x8xf32>
    %172 = arith.mulf %170, %171 : vector<5x5x8xf32>
    %cst_50 = arith.constant dense<0.000000e+00> : vector<5x8xf32>
    %173 = vector.multi_reduction <add>, %172, %cst_50 [0] : vector<5x5x8xf32> to vector<5x8xf32>
    %174 = arith.addf %158, %173 : vector<5x8xf32>
    %175 = arith.mulf %168, %174 : vector<5x8xf32>
    %176 = vector.broadcast %161 : vector<1x8xf32> to vector<5x8xf32>
    %177 = arith.mulf %175, %176 : vector<5x8xf32>
    %178 = arith.addf %133, %177 : vector<5x8xf32>
    %179 = vector.shape_cast %155 : vector<5x8xf32> to vector<5x1x8xf32>
    %180 = vector.shape_cast %158 : vector<5x8xf32> to vector<1x5x8xf32>
    %181 = vector.broadcast %179 : vector<5x1x8xf32> to vector<5x5x8xf32>
    %182 = vector.broadcast %180 : vector<1x5x8xf32> to vector<5x5x8xf32>
    %183 = arith.addf %181, %182 : vector<5x5x8xf32>
    %184 = vector.broadcast %2 : vector<5x5x1xf32> to vector<5x5x8xf32>
    %185 = arith.addf %183, %184 : vector<5x5x8xf32>
    %cst_51 = arith.constant dense<0xFF800000> : vector<5x8xf32>
    %186 = vector.multi_reduction <maximumf>, %185, %cst_51 [0] : vector<5x5x8xf32> to vector<5x8xf32>
    %187 = vector.shape_cast %186 : vector<5x8xf32> to vector<1x5x8xf32>
    %188 = vector.broadcast %187 : vector<1x5x8xf32> to vector<5x5x8xf32>
    %189 = arith.subf %185, %188 : vector<5x5x8xf32>
    %190 = math.exp %189 : vector<5x5x8xf32>
    %cst_52 = arith.constant dense<0.000000e+00> : vector<5x8xf32>
    %191 = vector.multi_reduction <add>, %190, %cst_52 [0] : vector<5x5x8xf32> to vector<5x8xf32>
    %192 = math.log %191 : vector<5x8xf32>
    %193 = arith.addf %186, %192 : vector<5x8xf32>
    %194 = vector.broadcast %161 : vector<1x8xf32> to vector<5x8xf32>
    %195 = arith.mulf %193, %194 : vector<5x8xf32>
    %cst_53 = arith.constant 1.000000e+00 : f32
    %196 = vector.broadcast %cst_53 : f32 to vector<1x8xf32>
    %197 = arith.subf %196, %161 : vector<1x8xf32>
    %198 = vector.broadcast %197 : vector<1x8xf32> to vector<5x8xf32>
    %199 = arith.mulf %155, %198 : vector<5x8xf32>
    %200 = arith.addf %195, %199 : vector<5x8xf32>
    %c5_i32 = arith.constant 5 : i32
    %201 = arith.index_cast %c5_i32 : i32 to index
    %c0_54 = arith.constant 0 : index
    %c0_55 = arith.constant 0 : index
    %202 = vector.load %arg1[%201, %c0_54, %c0_55] : memref<8x5x8xf32, #tpu.memory_space<vmem>>, vector<1x5x8xf32>
    %203 = vector.shape_cast %202 : vector<1x5x8xf32> to vector<5x8xf32>
    %204 = arith.index_cast %c5_i32 : i32 to index
    %c0_56 = arith.constant 0 : index
    %c0_57 = arith.constant 0 : index
    %205 = vector.load %arg3[%204, %c0_56, %c0_57] : memref<8x1x8xf32, #tpu.memory_space<vmem>>, vector<1x1x8xf32>
    %206 = vector.shape_cast %205 : vector<1x1x8xf32> to vector<1x8xf32>
    %207 = arith.index_cast %c5_i32 : i32 to index
    %c0_58 = arith.constant 0 : index
    %c0_59 = arith.constant 0 : index
    %208 = vector.load %arg2[%207, %c0_58, %c0_59] : memref<8x1x8xi32, #tpu.memory_space<vmem>>, vector<1x1x8xi32>
    %209 = vector.shape_cast %208 : vector<1x1x8xi32> to vector<1x8xi32>
    %210 = vector.broadcast %209 : vector<1x8xi32> to vector<5x8xi32>
    %211 = arith.cmpi eq, %3, %210 : vector<5x8xi32>
    %212 = arith.extui %211 : vector<5x8xi1> to vector<5x8xi32>
    %213 = arith.sitofp %212 : vector<5x8xi32> to vector<5x8xf32>
    %214 = vector.shape_cast %168 : vector<5x8xf32> to vector<5x1x8xf32>
    %215 = vector.broadcast %2 : vector<5x5x1xf32> to vector<5x5x8xf32>
    %216 = vector.broadcast %214 : vector<5x1x8xf32> to vector<5x5x8xf32>
    %217 = arith.mulf %215, %216 : vector<5x5x8xf32>
    %cst_60 = arith.constant dense<0.000000e+00> : vector<5x8xf32>
    %218 = vector.multi_reduction <add>, %217, %cst_60 [0] : vector<5x5x8xf32> to vector<5x8xf32>
    %219 = arith.addf %203, %218 : vector<5x8xf32>
    %220 = arith.mulf %213, %219 : vector<5x8xf32>
    %221 = vector.broadcast %206 : vector<1x8xf32> to vector<5x8xf32>
    %222 = arith.mulf %220, %221 : vector<5x8xf32>
    %223 = arith.addf %178, %222 : vector<5x8xf32>
    %224 = vector.shape_cast %200 : vector<5x8xf32> to vector<5x1x8xf32>
    %225 = vector.shape_cast %203 : vector<5x8xf32> to vector<1x5x8xf32>
    %226 = vector.broadcast %224 : vector<5x1x8xf32> to vector<5x5x8xf32>
    %227 = vector.broadcast %225 : vector<1x5x8xf32> to vector<5x5x8xf32>
    %228 = arith.addf %226, %227 : vector<5x5x8xf32>
    %229 = vector.broadcast %2 : vector<5x5x1xf32> to vector<5x5x8xf32>
    %230 = arith.addf %228, %229 : vector<5x5x8xf32>
    %cst_61 = arith.constant dense<0xFF800000> : vector<5x8xf32>
    %231 = vector.multi_reduction <maximumf>, %230, %cst_61 [0] : vector<5x5x8xf32> to vector<5x8xf32>
    %232 = vector.shape_cast %231 : vector<5x8xf32> to vector<1x5x8xf32>
    %233 = vector.broadcast %232 : vector<1x5x8xf32> to vector<5x5x8xf32>
    %234 = arith.subf %230, %233 : vector<5x5x8xf32>
    %235 = math.exp %234 : vector<5x5x8xf32>
    %cst_62 = arith.constant dense<0.000000e+00> : vector<5x8xf32>
    %236 = vector.multi_reduction <add>, %235, %cst_62 [0] : vector<5x5x8xf32> to vector<5x8xf32>
    %237 = math.log %236 : vector<5x8xf32>
    %238 = arith.addf %231, %237 : vector<5x8xf32>
    %239 = vector.broadcast %206 : vector<1x8xf32> to vector<5x8xf32>
    %240 = arith.mulf %238, %239 : vector<5x8xf32>
    %cst_63 = arith.constant 1.000000e+00 : f32
    %241 = vector.broadcast %cst_63 : f32 to vector<1x8xf32>
    %242 = arith.subf %241, %206 : vector<1x8xf32>
    %243 = vector.broadcast %242 : vector<1x8xf32> to vector<5x8xf32>
    %244 = arith.mulf %200, %243 : vector<5x8xf32>
    %245 = arith.addf %240, %244 : vector<5x8xf32>
    %c6_i32 = arith.constant 6 : i32
    %246 = arith.index_cast %c6_i32 : i32 to index
    %c0_64 = arith.constant 0 : index
    %c0_65 = arith.constant 0 : index
    %247 = vector.load %arg1[%246, %c0_64, %c0_65] : memref<8x5x8xf32, #tpu.memory_space<vmem>>, vector<1x5x8xf32>
    %248 = vector.shape_cast %247 : vector<1x5x8xf32> to vector<5x8xf32>
    %249 = arith.index_cast %c6_i32 : i32 to index
    %c0_66 = arith.constant 0 : index
    %c0_67 = arith.constant 0 : index
    %250 = vector.load %arg3[%249, %c0_66, %c0_67] : memref<8x1x8xf32, #tpu.memory_space<vmem>>, vector<1x1x8xf32>
    %251 = vector.shape_cast %250 : vector<1x1x8xf32> to vector<1x8xf32>
    %252 = arith.index_cast %c6_i32 : i32 to index
    %c0_68 = arith.constant 0 : index
    %c0_69 = arith.constant 0 : index
    %253 = vector.load %arg2[%252, %c0_68, %c0_69] : memref<8x1x8xi32, #tpu.memory_space<vmem>>, vector<1x1x8xi32>
    %254 = vector.shape_cast %253 : vector<1x1x8xi32> to vector<1x8xi32>
    %255 = vector.broadcast %254 : vector<1x8xi32> to vector<5x8xi32>
    %256 = arith.cmpi eq, %3, %255 : vector<5x8xi32>
    %257 = arith.extui %256 : vector<5x8xi1> to vector<5x8xi32>
    %258 = arith.sitofp %257 : vector<5x8xi32> to vector<5x8xf32>
    %259 = vector.shape_cast %213 : vector<5x8xf32> to vector<5x1x8xf32>
    %260 = vector.broadcast %2 : vector<5x5x1xf32> to vector<5x5x8xf32>
    %261 = vector.broadcast %259 : vector<5x1x8xf32> to vector<5x5x8xf32>
    %262 = arith.mulf %260, %261 : vector<5x5x8xf32>
    %cst_70 = arith.constant dense<0.000000e+00> : vector<5x8xf32>
    %263 = vector.multi_reduction <add>, %262, %cst_70 [0] : vector<5x5x8xf32> to vector<5x8xf32>
    %264 = arith.addf %248, %263 : vector<5x8xf32>
    %265 = arith.mulf %258, %264 : vector<5x8xf32>
    %266 = vector.broadcast %251 : vector<1x8xf32> to vector<5x8xf32>
    %267 = arith.mulf %265, %266 : vector<5x8xf32>
    %268 = arith.addf %223, %267 : vector<5x8xf32>
    %269 = vector.shape_cast %245 : vector<5x8xf32> to vector<5x1x8xf32>
    %270 = vector.shape_cast %248 : vector<5x8xf32> to vector<1x5x8xf32>
    %271 = vector.broadcast %269 : vector<5x1x8xf32> to vector<5x5x8xf32>
    %272 = vector.broadcast %270 : vector<1x5x8xf32> to vector<5x5x8xf32>
    %273 = arith.addf %271, %272 : vector<5x5x8xf32>
    %274 = vector.broadcast %2 : vector<5x5x1xf32> to vector<5x5x8xf32>
    %275 = arith.addf %273, %274 : vector<5x5x8xf32>
    %cst_71 = arith.constant dense<0xFF800000> : vector<5x8xf32>
    %276 = vector.multi_reduction <maximumf>, %275, %cst_71 [0] : vector<5x5x8xf32> to vector<5x8xf32>
    %277 = vector.shape_cast %276 : vector<5x8xf32> to vector<1x5x8xf32>
    %278 = vector.broadcast %277 : vector<1x5x8xf32> to vector<5x5x8xf32>
    %279 = arith.subf %275, %278 : vector<5x5x8xf32>
    %280 = math.exp %279 : vector<5x5x8xf32>
    %cst_72 = arith.constant dense<0.000000e+00> : vector<5x8xf32>
    %281 = vector.multi_reduction <add>, %280, %cst_72 [0] : vector<5x5x8xf32> to vector<5x8xf32>
    %282 = math.log %281 : vector<5x8xf32>
    %283 = arith.addf %276, %282 : vector<5x8xf32>
    %284 = vector.broadcast %251 : vector<1x8xf32> to vector<5x8xf32>
    %285 = arith.mulf %283, %284 : vector<5x8xf32>
    %cst_73 = arith.constant 1.000000e+00 : f32
    %286 = vector.broadcast %cst_73 : f32 to vector<1x8xf32>
    %287 = arith.subf %286, %251 : vector<1x8xf32>
    %288 = vector.broadcast %287 : vector<1x8xf32> to vector<5x8xf32>
    %289 = arith.mulf %245, %288 : vector<5x8xf32>
    %290 = arith.addf %285, %289 : vector<5x8xf32>
    %c7_i32 = arith.constant 7 : i32
    %291 = arith.index_cast %c7_i32 : i32 to index
    %c0_74 = arith.constant 0 : index
    %c0_75 = arith.constant 0 : index
    %292 = vector.load %arg1[%291, %c0_74, %c0_75] : memref<8x5x8xf32, #tpu.memory_space<vmem>>, vector<1x5x8xf32>
    %293 = vector.shape_cast %292 : vector<1x5x8xf32> to vector<5x8xf32>
    %294 = arith.index_cast %c7_i32 : i32 to index
    %c0_76 = arith.constant 0 : index
    %c0_77 = arith.constant 0 : index
    %295 = vector.load %arg3[%294, %c0_76, %c0_77] : memref<8x1x8xf32, #tpu.memory_space<vmem>>, vector<1x1x8xf32>
    %296 = vector.shape_cast %295 : vector<1x1x8xf32> to vector<1x8xf32>
    %297 = arith.index_cast %c7_i32 : i32 to index
    %c0_78 = arith.constant 0 : index
    %c0_79 = arith.constant 0 : index
    %298 = vector.load %arg2[%297, %c0_78, %c0_79] : memref<8x1x8xi32, #tpu.memory_space<vmem>>, vector<1x1x8xi32>
    %299 = vector.shape_cast %298 : vector<1x1x8xi32> to vector<1x8xi32>
    %300 = vector.broadcast %299 : vector<1x8xi32> to vector<5x8xi32>
    %301 = arith.cmpi eq, %3, %300 : vector<5x8xi32>
    %302 = arith.extui %301 : vector<5x8xi1> to vector<5x8xi32>
    %303 = arith.sitofp %302 : vector<5x8xi32> to vector<5x8xf32>
    %304 = vector.shape_cast %258 : vector<5x8xf32> to vector<5x1x8xf32>
    %305 = vector.broadcast %2 : vector<5x5x1xf32> to vector<5x5x8xf32>
    %306 = vector.broadcast %304 : vector<5x1x8xf32> to vector<5x5x8xf32>
    %307 = arith.mulf %305, %306 : vector<5x5x8xf32>
    %cst_80 = arith.constant dense<0.000000e+00> : vector<5x8xf32>
    %308 = vector.multi_reduction <add>, %307, %cst_80 [0] : vector<5x5x8xf32> to vector<5x8xf32>
    %309 = arith.addf %293, %308 : vector<5x8xf32>
    %310 = arith.mulf %303, %309 : vector<5x8xf32>
    %311 = vector.broadcast %296 : vector<1x8xf32> to vector<5x8xf32>
    %312 = arith.mulf %310, %311 : vector<5x8xf32>
    %313 = arith.addf %268, %312 : vector<5x8xf32>
    %314 = vector.shape_cast %290 : vector<5x8xf32> to vector<5x1x8xf32>
    %315 = vector.shape_cast %293 : vector<5x8xf32> to vector<1x5x8xf32>
    %316 = vector.broadcast %314 : vector<5x1x8xf32> to vector<5x5x8xf32>
    %317 = vector.broadcast %315 : vector<1x5x8xf32> to vector<5x5x8xf32>
    %318 = arith.addf %316, %317 : vector<5x5x8xf32>
    %319 = vector.broadcast %2 : vector<5x5x1xf32> to vector<5x5x8xf32>
    %320 = arith.addf %318, %319 : vector<5x5x8xf32>
    %cst_81 = arith.constant dense<0xFF800000> : vector<5x8xf32>
    %321 = vector.multi_reduction <maximumf>, %320, %cst_81 [0] : vector<5x5x8xf32> to vector<5x8xf32>
    %322 = vector.shape_cast %321 : vector<5x8xf32> to vector<1x5x8xf32>
    %323 = vector.broadcast %322 : vector<1x5x8xf32> to vector<5x5x8xf32>
    %324 = arith.subf %320, %323 : vector<5x5x8xf32>
    %325 = math.exp %324 : vector<5x5x8xf32>
    %cst_82 = arith.constant dense<0.000000e+00> : vector<5x8xf32>
    %326 = vector.multi_reduction <add>, %325, %cst_82 [0] : vector<5x5x8xf32> to vector<5x8xf32>
    %327 = math.log %326 : vector<5x8xf32>
    %328 = arith.addf %321, %327 : vector<5x8xf32>
    %329 = vector.broadcast %296 : vector<1x8xf32> to vector<5x8xf32>
    %330 = arith.mulf %328, %329 : vector<5x8xf32>
    %cst_83 = arith.constant 1.000000e+00 : f32
    %331 = vector.broadcast %cst_83 : f32 to vector<1x8xf32>
    %332 = arith.subf %331, %296 : vector<1x8xf32>
    %333 = vector.broadcast %332 : vector<1x8xf32> to vector<5x8xf32>
    %334 = arith.mulf %290, %333 : vector<5x8xf32>
    %335 = arith.addf %330, %334 : vector<5x8xf32>
    %c7_i32_84 = arith.constant 7 : i32
    %c0_85 = arith.constant 0 : index
    %c0_86 = arith.constant 0 : index
    %c0_87 = arith.constant 0 : index
    %336 = vector.load %arg2[%c0_85, %c0_86, %c0_87] : memref<8x1x8xi32, #tpu.memory_space<vmem>>, vector<8x1x8xi32>
    %337 = vector.shape_cast %336 : vector<8x1x8xi32> to vector<8x8xi32>
    %c0_88 = arith.constant 0 : index
    %c0_89 = arith.constant 0 : index
    %c0_90 = arith.constant 0 : index
    %338 = vector.load %arg3[%c0_88, %c0_89, %c0_90] : memref<8x1x8xf32, #tpu.memory_space<vmem>>, vector<8x1x8xf32>
    %339 = vector.shape_cast %338 : vector<8x1x8xf32> to vector<8x8xf32>
    %cst_91 = arith.constant dense<0.000000e+00> : vector<8xf32>
    %340 = vector.multi_reduction <add>, %339, %cst_91 [0] : vector<8x8xf32> to vector<8xf32>
    %341 = arith.fptosi %340 : vector<8xf32> to vector<8xi32>
    %c1_i32_92 = arith.constant 1 : i32
    %342 = vector.broadcast %c1_i32_92 : i32 to vector<8xi32>
    %343 = arith.subi %341, %342 : vector<8xi32>
    %344 = tpu.iota {dimensions = array<i32: 0>} : vector<8x8xi32>
    %345 = vector.shape_cast %343 : vector<8xi32> to vector<1x8xi32>
    %346 = vector.broadcast %345 : vector<1x8xi32> to vector<8x8xi32>
    %347 = arith.cmpi eq, %344, %346 : vector<8x8xi32>
    %348 = arith.extui %347 : vector<8x8xi1> to vector<8x8xi32>
    %349 = arith.muli %348, %337 : vector<8x8xi32>
    %cst_93 = arith.constant dense<0> : vector<8xi32>
    %350 = vector.multi_reduction <add>, %349, %cst_93 [0] : vector<8x8xi32> to vector<8xi32>
    %351 = vector.shape_cast %350 : vector<8xi32> to vector<1x8xi32>
    %352 = vector.broadcast %351 : vector<1x8xi32> to vector<5x8xi32>
    %353 = arith.cmpi eq, %3, %352 : vector<5x8xi32>
    %354 = arith.extui %353 : vector<5x8xi1> to vector<5x8xi32>
    %355 = arith.sitofp %354 : vector<5x8xi32> to vector<5x8xf32>
    %356 = vector.broadcast %1 : vector<5x1xf32> to vector<5x8xf32>
    %357 = arith.mulf %355, %356 : vector<5x8xf32>
    %358 = arith.addf %313, %357 : vector<5x8xf32>
    %cst_94 = arith.constant dense<0.000000e+00> : vector<8xf32>
    %359 = vector.multi_reduction <add>, %358, %cst_94 [0] : vector<5x8xf32> to vector<8xf32>
    %360 = vector.broadcast %1 : vector<5x1xf32> to vector<5x8xf32>
    %361 = arith.addf %335, %360 : vector<5x8xf32>
    %cst_95 = arith.constant dense<0xFF800000> : vector<8xf32>
    %362 = vector.multi_reduction <maximumf>, %361, %cst_95 [0] : vector<5x8xf32> to vector<8xf32>
    %363 = vector.shape_cast %362 : vector<8xf32> to vector<1x8xf32>
    %364 = vector.broadcast %363 : vector<1x8xf32> to vector<5x8xf32>
    %365 = arith.subf %361, %364 : vector<5x8xf32>
    %366 = math.exp %365 : vector<5x8xf32>
    %cst_96 = arith.constant dense<0.000000e+00> : vector<8xf32>
    %367 = vector.multi_reduction <add>, %366, %cst_96 [0] : vector<5x8xf32> to vector<8xf32>
    %368 = math.log %367 : vector<8xf32>
    %369 = arith.addf %362, %368 : vector<8xf32>
    %370 = arith.subf %359, %369 : vector<8xf32>
    %371 = vector.shape_cast %370 : vector<8xf32> to vector<1x8xf32>
    %cst_97 = arith.constant dense<0.000000e+00> : vector<1xf32>
    %372 = vector.multi_reduction <add>, %371, %cst_97 [1] : vector<1x8xf32> to vector<1xf32>
    %373 = vector.shape_cast %372 : vector<1xf32> to vector<1x1xf32>
    %374 = vector.extract %373[0, 0] : f32 from vector<1x1xf32>
    %c0_98 = arith.constant 0 : index
    %c0_99 = arith.constant 0 : index
    %375 = memref.load %arg7[%c0_98, %c0_99] : memref<1x1xf32, #tpu.memory_space<smem>>
    memref.store %374, %arg7[%c0_98, %c0_99] : memref<1x1xf32, #tpu.memory_space<smem>>
    return
  }
  func.func @transform_0(%arg0: i32) -> (i32, i32, i32) {
    %c0_i32 = arith.constant 0 : i32
    %c0_i32_0 = arith.constant 0 : i32
    %c0_i32_1 = arith.constant 0 : i32
    return %c0_i32, %c0_i32_0, %arg0 : i32, i32, i32
  }
  func.func @transform_1(%arg0: i32) -> (i32, i32, i32) {
    %c0_i32 = arith.constant 0 : i32
    %c0_i32_0 = arith.constant 0 : i32
    %c0_i32_1 = arith.constant 0 : i32
    return %c0_i32, %c0_i32_0, %arg0 : i32, i32, i32
  }
  func.func @transform_2(%arg0: i32) -> (i32, i32, i32) {
    %c0_i32 = arith.constant 0 : i32
    %c0_i32_0 = arith.constant 0 : i32
    %c0_i32_1 = arith.constant 0 : i32
    return %c0_i32, %c0_i32_0, %arg0 : i32, i32, i32
  }
  func.func @transform_3(%arg0: i32) -> (i32, i32) {
    %c0_i32 = arith.constant 0 : i32
    %c0_i32_0 = arith.constant 0 : i32
    %c0_i32_1 = arith.constant 0 : i32
    return %c0_i32, %c0_i32_0 : i32, i32
  }
  func.func @transform_4(%arg0: i32) -> (i32, i32, i32) {
    %c0_i32 = arith.constant 0 : i32
    %c0_i32_0 = arith.constant 0 : i32
    %c0_i32_1 = arith.constant 0 : i32
    %c0_i32_2 = arith.constant 0 : i32
    return %c0_i32, %c0_i32_0, %c0_i32_1 : i32, i32, i32
  }
  func.func @transform_5(%arg0: i32) -> (i32, i32) {
    %c0_i32 = arith.constant 0 : i32
    %c0_i32_0 = arith.constant 0 : i32
    %c0_i32_1 = arith.constant 0 : i32
    return %c0_i32, %c0_i32_0 : i32, i32
  }
  func.func @transform_6(%arg0: i32) -> (i32, i32) {
    %c0_i32 = arith.constant 0 : i32
    %c0_i32_0 = arith.constant 0 : i32
    return %arg0, %c0_i32 : i32, i32
  }
}

</mosaic_0001>

<llo_original>
// kernel: tpu_custom_call.1
$region0: #{tpu_custom_call.1}
  #allocation0 [shape = 'u32[]', space=smem, size = 0x4, offset = 0x4, fixed_abs, tag = 'smem constant byte address 0x4 - core index']
  #allocation1 [shape = 'u32[144,128]{1,0:T(1,128)}', space=vmem, size = 0x12000, scoped, tag = 'internal scratch']
  %s0 = inlined_call_operand.vmem [shape: f32[8,5,8], index: 0, kind: input, shape index: {}]
  %s1 = inlined_call_operand.vmem [shape: s32[8,1,8], index: 1, kind: input, shape index: {}]
  %s2 = inlined_call_operand.vmem [shape: f32[8,1,8], index: 2, kind: input, shape index: {}]
  %s3 = inlined_call_operand.vmem [shape: f32[5,1], index: 3, kind: input, shape index: {}]
  %s4 = inlined_call_operand.vmem [shape: f32[5,5,1], index: 4, kind: input, shape index: {}]
  %s5 = inlined_call_operand.vmem [shape: f32[5,1], index: 5, kind: input, shape index: {}]
  %s6 = inlined_call_operand.hbm [shape: f32[1,1], index: 6, kind: output, shape index: {}]
  %s7 = sld [smem:[#allocation0]]
  $region34: #{tpu_custom_call.1} parent=0
    _
  %s9 = ssub.s32 1, %s7
  %s10 = scalar_select 0, %s9, %s7
  $region1: #{tpu_custom_call.1} parent=0
    #allocation2 [shape = 'u8[512]{0}', space=smem, size = 0x200, scoped, tag = 'output window, operand 0, single buffered']
    #allocation3 [shape = 's32[1]{0}', space=sflag, size = 0x4, scoped, tag = 'scoped memory for tpu_custom_call.1']
    %11 = vsyncpa [#allocation3], 0
    // Predicated region
    $region2: #{tpu_custom_call.1} parent=1 // pred_check
      _
    $region3: #{tpu_custom_call.1} parent=1 // pred_check_branch
      %13 = sbr.rel (0) target = $region5
    $region4: #{tpu_custom_call.1} parent=1 // pred_region
      _
    $region5: #{tpu_custom_call.1} parent=1 // pred_fallthru
      _
    // Predicated region
    $region6: #{tpu_custom_call.1} parent=1 // pred_check
      _
    $region7: #{tpu_custom_call.1} parent=1 // pred_check_branch
      %15 = sbr.rel (0) target = $region9
    $region8: #{tpu_custom_call.1} parent=1 // pred_region
      _
    $region9: #{tpu_custom_call.1} parent=1 // pred_fallthru
      _
    // Predicated region
    $region10: #{tpu_custom_call.1} parent=1 // pred_check
      _
    $region11: #{tpu_custom_call.1} parent=1 // pred_check_branch
      %17 = sbr.rel (0) target = $region13
    $region12: #{tpu_custom_call.1} parent=1 // pred_region
      _
    $region13: #{tpu_custom_call.1} parent=1 // pred_fallthru
      _
    // Predicated region
    $region14: #{tpu_custom_call.1} parent=1 // pred_check
      _
    $region15: #{tpu_custom_call.1} parent=1 // pred_check_branch
      %19 = sbr.rel (0) target = $region17
    $region16: #{tpu_custom_call.1} parent=1 // pred_region
      _
    $region17: #{tpu_custom_call.1} parent=1 // pred_fallthru
      _
    // Predicated region
    $region18: #{tpu_custom_call.1} parent=1 // pred_check
      _
    $region19: #{tpu_custom_call.1} parent=1 // pred_check_branch
      %21 = sbr.rel (0) target = $region21
    $region20: #{tpu_custom_call.1} parent=1 // pred_region
      _
    $region21: #{tpu_custom_call.1} parent=1 // pred_fallthru
      _
    // Predicated region
    $region22: #{tpu_custom_call.1} parent=1 // pred_check
      _
    $region23: #{tpu_custom_call.1} parent=1 // pred_check_branch
      %23 = sbr.rel (0) target = $region25
    $region24: #{tpu_custom_call.1} parent=1 // pred_region
      _
    $region25: #{tpu_custom_call.1} parent=1 // pred_fallthru
      _
    %v24 = vld [vmem:[%s3] sm:$0x1f]
    %v25 = vld [vmem:[%s5] sm:$0x1f]
    %v26 = vld [vmem:[%s4] sm:$0x1f]
    %v27 = vld [vmem:[%s4 + $0x8] sm:$0x1f]
    %v28 = vld [vmem:[%s4 + $0x10] sm:$0x1f]
    %v29 = vld [vmem:[%s4 + $0x18] sm:$0x1f]
    %v30 = vld [vmem:[%s4 + $0x20] sm:$0x1f]
    %v31 = vlaneseq
    %v32 = vshrl.u32 %v31, 7
    %v33 = vld [vmem:[%s0] sm:$0x1f]
    %v34 = vld [vmem:[%s2] sm:$0x1]
    %v35 = vld [vmem:[%s1] sm:$0x1]
    %v36 = vlaneseq
    %v37 = vshrl.u32 %v36, 7
    %v38 = vsub.s32 0, %v37
    %v39 = vrot.slane %v35, %v38
    %vm40 = vcmp.eq.s32.totalorder %v32, %v39
    %v41 = vsel %vm40, 1, 0
    %v42 = vcvt.s32.f32 %v41
    %v44 = vlaneseq
    %v45 = vshrl.u32 %v44, 7
    %v46 = vsub.s32 0, %v45
    %v47 = vrot.slane %v34, %v46
    %v49 = vmul.f32 %v33, %v47
    %51 = vset.pattern.permute.xlu0 0
    %52 = vperm.xlu0 %51, %v24
    %v53 = vpop.permute.xlu0 %52
    %v55 = vadd.f32 %v53, %v49
    %v56 = vmul.f32 %v42, %v55
    %v57 = vadd.f32 %v53, %v33
    %s58 = scalar_lea.vmem %s0, 8
    %v59 = vld [vmem:[%s58] sm:$0x1f]
    %s60 = scalar_lea.vmem %s2, 1
    %v61 = vld [vmem:[%s60] sm:$0x1]
    %s62 = scalar_lea.vmem %s1, 1
    %v63 = vld [vmem:[%s62] sm:$0x1]
    %v64 = vlaneseq
    %v65 = vshrl.u32 %v64, 7
    %v66 = vsub.s32 0, %v65
    %v67 = vrot.slane %v63, %v66
    %vm68 = vcmp.eq.s32.totalorder %v32, %v67
    %v69 = vsel %vm68, 1, 0
    %v70 = vcvt.s32.f32 %v69
    %v72 = vcombine.high %v42, %v42
    %v74 = vunpack.c.l.s4 1966171168
    %v75 = vunpack.c.0.s8 %v74
    %v76 = vlaneseq
    %v77 = vshrl.u32 %v76, 7
    %v78 = vsub.s32 %v75, %v77
    %v79 = vrot.slane %v42, %v78
    %v81 = vunpack.c.l.s4 1966171168
    %v82 = vunpack.c.0.s8 %v81
    %v83 = vlaneseq
    %v84 = vshrl.u32 %v83, 7
    %v85 = vsub.s32 %v82, %v84
    %v86 = vrot.slane %v72, %v85
    %v87 = vcombine.high %v79, %v79
    %v89 = vunpack.c.l.s4 1966171168
    %v90 = vunpack.c.0.s8 %v89
    %v91 = vlaneseq
    %v92 = vshrl.u32 %v91, 7
    %v93 = vsub.s32 %v90, %v92
    %v94 = vrot.slane %v79, %v93
    %v96 = vunpack.c.l.s4 1966171168
    %v97 = vunpack.c.0.s8 %v96
    %v98 = vlaneseq
    %v99 = vshrl.u32 %v98, 7
    %v100 = vsub.s32 %v97, %v99
    %v101 = vrot.slane %v86, %v100
    %v103 = vunpack.c.l.s4 1966171168
    %v104 = vunpack.c.0.s8 %v103
    %v105 = vlaneseq
    %v106 = vshrl.u32 %v105, 7
    %v107 = vsub.s32 %v104, %v106
    %v108 = vrot.slane %v87, %v107
    %v109 = vcombine.high %v94, %v94
    %v110 = vcombine.high %v108, %v108
    %112 = vset.pattern.permute.xlu0 0
    %113 = vperm.xlu0 %112, %v26
    %v114 = vpop.permute.xlu0 %113
    %117 = vset.pattern.permute.xlu0 0
    %118 = vperm.xlu0 %117, %v27
    %v119 = vpop.permute.xlu0 %118
    %122 = vset.pattern.permute.xlu0 0
    %123 = vperm.xlu0 %122, %v28
    %v124 = vpop.permute.xlu0 %123
    %127 = vset.pattern.permute.xlu0 0
    %128 = vperm.xlu0 %127, %v29
    %v129 = vpop.permute.xlu0 %128
    %132 = vset.pattern.permute.xlu0 0
    %133 = vperm.xlu0 %132, %v30
    %v134 = vpop.permute.xlu0 %133
    %v136 = vlaneseq
    %v137 = vshrl.u32 %v136, 7
    %v138 = vsub.s32 0, %v137
    %v139 = vrot.slane %v94, %v138
    %v140 = vlaneseq
    %v141 = vshrl.u32 %v140, 7
    %v142 = vsub.s32 0, %v141
    %v143 = vrot.slane %v108, %v142
    %v144 = vlaneseq
    %v145 = vshrl.u32 %v144, 7
    %v146 = vsub.s32 0, %v145
    %v147 = vrot.slane %v109, %v146
    %v148 = vlaneseq
    %v149 = vshrl.u32 %v148, 7
    %v150 = vsub.s32 0, %v149
    %v151 = vrot.slane %v110, %v150
    %v152 = vlaneseq
    %v153 = vshrl.u32 %v152, 7
    %v154 = vsub.s32 0, %v153
    %v155 = vrot.slane %v101, %v154
    %v161 = vmul.f32 %v114, %v139
    %v162 = vmul.f32 %v119, %v143
    %v163 = vmul.f32 %v124, %v147
    %v164 = vmul.f32 %v129, %v151
    %v165 = vmul.f32 %v134, %v155
    %vm166 = vcmask 61440
    %v167 = vsel %vm166, %v161, 0.0
    %v168 = vsel %vm166, %v162, 0.0
    %v169 = vadd.f32 %v167, %v168
    %v170 = vsel %vm166, %v163, 0.0
    %v171 = vadd.f32 %v169, %v170
    %v172 = vsel %vm166, %v164, 0.0
    %v173 = vadd.f32 %v171, %v172
    %v174 = vsel %vm166, %v165, 0.0
    %v175 = vadd.f32 %v173, %v174
    %v176 = vadd.f32 %v59, %v175
    %v177 = vmul.f32 %v70, %v176
    %v179 = vlaneseq
    %v180 = vshrl.u32 %v179, 7
    %v181 = vsub.s32 0, %v180
    %v182 = vrot.slane %v61, %v181
    %v184 = vmul.f32 %v177, %v182
    %v185 = vadd.f32 %v56, %v184
    %v187 = vcombine.high %v57, %v57
    %v189 = vunpack.c.l.s4 1966171168
    %v190 = vunpack.c.0.s8 %v189
    %v191 = vlaneseq
    %v192 = vshrl.u32 %v191, 7
    %v193 = vsub.s32 %v190, %v192
    %v194 = vrot.slane %v57, %v193
    %v196 = vunpack.c.l.s4 1966171168
    %v197 = vunpack.c.0.s8 %v196
    %v198 = vlaneseq
    %v199 = vshrl.u32 %v198, 7
    %v200 = vsub.s32 %v197, %v199
    %v201 = vrot.slane %v187, %v200
    %v202 = vcombine.high %v194, %v194
    %v204 = vunpack.c.l.s4 1966171168
    %v205 = vunpack.c.0.s8 %v204
    %v206 = vlaneseq
    %v207 = vshrl.u32 %v206, 7
    %v208 = vsub.s32 %v205, %v207
    %v209 = vrot.slane %v194, %v208
    %v211 = vunpack.c.l.s4 1966171168
    %v212 = vunpack.c.0.s8 %v211
    %v213 = vlaneseq
    %v214 = vshrl.u32 %v213, 7
    %v215 = vsub.s32 %v212, %v214
    %v216 = vrot.slane %v201, %v215
    %v218 = vunpack.c.l.s4 1966171168
    %v219 = vunpack.c.0.s8 %v218
    %v220 = vlaneseq
    %v221 = vshrl.u32 %v220, 7
    %v222 = vsub.s32 %v219, %v221
    %v223 = vrot.slane %v202, %v222
    %v224 = vcombine.high %v209, %v209
    %v225 = vcombine.high %v223, %v223
    %v226 = vlaneseq
    %v227 = vshrl.u32 %v226, 7
    %v228 = vsub.s32 0, %v227
    %v229 = vrot.slane %v209, %v228
    %v230 = vlaneseq
    %v231 = vshrl.u32 %v230, 7
    %v232 = vsub.s32 0, %v231
    %v233 = vrot.slane %v223, %v232
    %v234 = vlaneseq
    %v235 = vshrl.u32 %v234, 7
    %v236 = vsub.s32 0, %v235
    %v237 = vrot.slane %v224, %v236
    %v238 = vlaneseq
    %v239 = vshrl.u32 %v238, 7
    %v240 = vsub.s32 0, %v239
    %v241 = vrot.slane %v225, %v240
    %v242 = vlaneseq
    %v243 = vshrl.u32 %v242, 7
    %v244 = vsub.s32 0, %v243
    %v245 = vrot.slane %v216, %v244
    %v251 = vadd.f32 %v229, %v59
    %v252 = vadd.f32 %v233, %v59
    %v253 = vadd.f32 %v237, %v59
    %v254 = vadd.f32 %v241, %v59
    %v255 = vadd.f32 %v245, %v59
    %v256 = vadd.f32 %v251, %v114
    %v257 = vadd.f32 %v252, %v119
    %v258 = vadd.f32 %v253, %v124
    %v259 = vadd.f32 %v254, %v129
    %v260 = vadd.f32 %v255, %v134
    %v261 = vsel %vm166, %v256, -inf
    %v262 = vsel %vm166, %v257, -inf
    %v263 = vsel %vm166, %v258, -inf
    %v264 = vsel %vm166, %v259, -inf
    %v265 = vsel %vm166, %v260, -inf
    %v266 = vmax.f32 %v261, %v265
    %v267 = vmax.f32 %v266, %v262
    %v268 = vmax.f32 %v263, %v264
    %v269 = vmax.f32 %v267, %v268
    %v270 = vsub.f32 %v256, %v269
    %v271 = vsub.f32 %v257, %v269
    %v272 = vsub.f32 %v258, %v269
    %v273 = vsub.f32 %v259, %v269
    %v274 = vsub.f32 %v260, %v269
    %v275 = vmul.f32 %v270, 1.442695
    %v276 = vpow.pop %v275
    %v277 = vmul.f32 %v271, 1.442695
    %v278 = vpow.pop %v277
    %v279 = vmul.f32 %v272, 1.442695
    %v280 = vpow.pop %v279
    %v281 = vmul.f32 %v273, 1.442695
    %v282 = vpow.pop %v281
    %v283 = vmul.f32 %v274, 1.442695
    %v284 = vpow.pop %v283
    %v285 = vsel %vm166, %v276, 0.0
    %v286 = vsel %vm166, %v278, 0.0
    %v287 = vadd.f32 %v285, %v286
    %v288 = vsel %vm166, %v280, 0.0
    %v289 = vadd.f32 %v287, %v288
    %v290 = vsel %vm166, %v282, 0.0
    %v291 = vadd.f32 %v289, %v290
    %v292 = vsel %vm166, %v284, 0.0
    %v293 = vadd.f32 %v291, %v292
    %v294 = vlog2.pop %v293
    %v295 = vmul.f32 %v294, 0.6931472
    %v296 = vadd.f32 %v269, %v295
    %v297 = vmul.f32 %v296, %v182
    %v298 = vsub.f32 1.0, %v61
    %v300 = vlaneseq
    %v301 = vshrl.u32 %v300, 7
    %v302 = vsub.s32 0, %v301
    %v303 = vrot.slane %v298, %v302
    %v305 = vmul.f32 %v57, %v303
    %v306 = vadd.f32 %v297, %v305
    %s307 = scalar_lea.vmem %s0, 16
    %v308 = vld [vmem:[%s307] sm:$0x1f]
    %s309 = scalar_lea.vmem %s2, 2
    %v310 = vld [vmem:[%s309] sm:$0x1]
    %s311 = scalar_lea.vmem %s1, 2
    %v312 = vld [vmem:[%s311] sm:$0x1]
    %v313 = vlaneseq
    %v314 = vshrl.u32 %v313, 7
    %v315 = vsub.s32 0, %v314
    %v316 = vrot.slane %v312, %v315
    %vm317 = vcmp.eq.s32.totalorder %v32, %v316
    %v318 = vsel %vm317, 1, 0
    %v319 = vcvt.s32.f32 %v318
    %v321 = vcombine.high %v70, %v70
    %v323 = vunpack.c.l.s4 1966171168
    %v324 = vunpack.c.0.s8 %v323
    %v325 = vlaneseq
    %v326 = vshrl.u32 %v325, 7
    %v327 = vsub.s32 %v324, %v326
    %v328 = vrot.slane %v70, %v327
    %v330 = vunpack.c.l.s4 1966171168
    %v331 = vunpack.c.0.s8 %v330
    %v332 = vlaneseq
    %v333 = vshrl.u32 %v332, 7
    %v334 = vsub.s32 %v331, %v333
    %v335 = vrot.slane %v321, %v334
    %v336 = vcombine.high %v328, %v328
    %v338 = vunpack.c.l.s4 1966171168
    %v339 = vunpack.c.0.s8 %v338
    %v340 = vlaneseq
    %v341 = vshrl.u32 %v340, 7
    %v342 = vsub.s32 %v339, %v341
    %v343 = vrot.slane %v328, %v342
    %v345 = vunpack.c.l.s4 1966171168
    %v346 = vunpack.c.0.s8 %v345
    %v347 = vlaneseq
    %v348 = vshrl.u32 %v347, 7
    %v349 = vsub.s32 %v346, %v348
    %v350 = vrot.slane %v335, %v349
    %v352 = vunpack.c.l.s4 1966171168
    %v353 = vunpack.c.0.s8 %v352
    %v354 = vlaneseq
    %v355 = vshrl.u32 %v354, 7
    %v356 = vsub.s32 %v353, %v355
    %v357 = vrot.slane %v336, %v356
    %v358 = vcombine.high %v343, %v343
    %v359 = vcombine.high %v357, %v357
    %v360 = vlaneseq
    %v361 = vshrl.u32 %v360, 7
    %v362 = vsub.s32 0, %v361
    %v363 = vrot.slane %v343, %v362
    %v364 = vlaneseq
    %v365 = vshrl.u32 %v364, 7
    %v366 = vsub.s32 0, %v365
    %v367 = vrot.slane %v357, %v366
    %v368 = vlaneseq
    %v369 = vshrl.u32 %v368, 7
    %v370 = vsub.s32 0, %v369
    %v371 = vrot.slane %v358, %v370
    %v372 = vlaneseq
    %v373 = vshrl.u32 %v372, 7
    %v374 = vsub.s32 0, %v373
    %v375 = vrot.slane %v359, %v374
    %v376 = vlaneseq
    %v377 = vshrl.u32 %v376, 7
    %v378 = vsub.s32 0, %v377
    %v379 = vrot.slane %v350, %v378
    %v385 = vmul.f32 %v114, %v363
    %v386 = vmul.f32 %v119, %v367
    %v387 = vmul.f32 %v124, %v371
    %v388 = vmul.f32 %v129, %v375
    %v389 = vmul.f32 %v134, %v379
    %v390 = vsel %vm166, %v385, 0.0
    %v391 = vsel %vm166, %v386, 0.0
    %v392 = vadd.f32 %v390, %v391
    %v393 = vsel %vm166, %v387, 0.0
    %v394 = vadd.f32 %v392, %v393
    %v395 = vsel %vm166, %v388, 0.0
    %v396 = vadd.f32 %v394, %v395
    %v397 = vsel %vm166, %v389, 0.0
    %v398 = vadd.f32 %v396, %v397
    %v399 = vadd.f32 %v308, %v398
    %v400 = vmul.f32 %v319, %v399
    %v402 = vlaneseq
    %v403 = vshrl.u32 %v402, 7
    %v404 = vsub.s32 0, %v403
    %v405 = vrot.slane %v310, %v404
    %v407 = vmul.f32 %v400, %v405
    %v408 = vadd.f32 %v185, %v407
    %v410 = vcombine.high %v306, %v306
    %v412 = vunpack.c.l.s4 1966171168
    %v413 = vunpack.c.0.s8 %v412
    %v414 = vlaneseq
    %v415 = vshrl.u32 %v414, 7
    %v416 = vsub.s32 %v413, %v415
    %v417 = vrot.slane %v306, %v416
    %v419 = vunpack.c.l.s4 1966171168
    %v420 = vunpack.c.0.s8 %v419
    %v421 = vlaneseq
    %v422 = vshrl.u32 %v421, 7
    %v423 = vsub.s32 %v420, %v422
    %v424 = vrot.slane %v410, %v423
    %v425 = vcombine.high %v417, %v417
    %v427 = vunpack.c.l.s4 1966171168
    %v428 = vunpack.c.0.s8 %v427
    %v429 = vlaneseq
    %v430 = vshrl.u32 %v429, 7
    %v431 = vsub.s32 %v428, %v430
    %v432 = vrot.slane %v417, %v431
    %v434 = vunpack.c.l.s4 1966171168
    %v435 = vunpack.c.0.s8 %v434
    %v436 = vlaneseq
    %v437 = vshrl.u32 %v436, 7
    %v438 = vsub.s32 %v435, %v437
    %v439 = vrot.slane %v424, %v438
    %v441 = vunpack.c.l.s4 1966171168
    %v442 = vunpack.c.0.s8 %v441
    %v443 = vlaneseq
    %v444 = vshrl.u32 %v443, 7
    %v445 = vsub.s32 %v442, %v444
    %v446 = vrot.slane %v425, %v445
    %v447 = vcombine.high %v432, %v432
    %v448 = vcombine.high %v446, %v446
    %v449 = vlaneseq
    %v450 = vshrl.u32 %v449, 7
    %v451 = vsub.s32 0, %v450
    %v452 = vrot.slane %v432, %v451
    %v453 = vlaneseq
    %v454 = vshrl.u32 %v453, 7
    %v455 = vsub.s32 0, %v454
    %v456 = vrot.slane %v446, %v455
    %v457 = vlaneseq
    %v458 = vshrl.u32 %v457, 7
    %v459 = vsub.s32 0, %v458
    %v460 = vrot.slane %v447, %v459
    %v461 = vlaneseq
    %v462 = vshrl.u32 %v461, 7
    %v463 = vsub.s32 0, %v462
    %v464 = vrot.slane %v448, %v463
    %v465 = vlaneseq
    %v466 = vshrl.u32 %v465, 7
    %v467 = vsub.s32 0, %v466
    %v468 = vrot.slane %v439, %v467
    %v474 = vadd.f32 %v452, %v308
    %v475 = vadd.f32 %v456, %v308
    %v476 = vadd.f32 %v460, %v308
    %v477 = vadd.f32 %v464, %v308
    %v478 = vadd.f32 %v468, %v308
    %v479 = vadd.f32 %v474, %v114
    %v480 = vadd.f32 %v475, %v119
    %v481 = vadd.f32 %v476, %v124
    %v482 = vadd.f32 %v477, %v129
    %v483 = vadd.f32 %v478, %v134
    %v484 = vsel %vm166, %v479, -inf
    %v485 = vsel %vm166, %v480, -inf
    %v486 = vsel %vm166, %v481, -inf
    %v487 = vsel %vm166, %v482, -inf
    %v488 = vsel %vm166, %v483, -inf
    %v489 = vmax.f32 %v484, %v488
    %v490 = vmax.f32 %v489, %v485
    %v491 = vmax.f32 %v486, %v487
    %v492 = vmax.f32 %v490, %v491
    %v493 = vsub.f32 %v479, %v492
    %v494 = vsub.f32 %v480, %v492
    %v495 = vsub.f32 %v481, %v492
    %v496 = vsub.f32 %v482, %v492
    %v497 = vsub.f32 %v483, %v492
    %v498 = vmul.f32 %v493, 1.442695
    %v499 = vpow.pop %v498
    %v500 = vmul.f32 %v494, 1.442695
    %v501 = vpow.pop %v500
    %v502 = vmul.f32 %v495, 1.442695
    %v503 = vpow.pop %v502
    %v504 = vmul.f32 %v496, 1.442695
    %v505 = vpow.pop %v504
    %v506 = vmul.f32 %v497, 1.442695
    %v507 = vpow.pop %v506
    %v508 = vsel %vm166, %v499, 0.0
    %v509 = vsel %vm166, %v501, 0.0
    %v510 = vadd.f32 %v508, %v509
    %v511 = vsel %vm166, %v503, 0.0
    %v512 = vadd.f32 %v510, %v511
    %v513 = vsel %vm166, %v505, 0.0
    %v514 = vadd.f32 %v512, %v513
    %v515 = vsel %vm166, %v507, 0.0
    %v516 = vadd.f32 %v514, %v515
    %v517 = vlog2.pop %v516
    %v518 = vmul.f32 %v517, 0.6931472
    %v519 = vadd.f32 %v492, %v518
    %v520 = vmul.f32 %v519, %v405
    %v521 = vsub.f32 1.0, %v310
    %v523 = vlaneseq
    %v524 = vshrl.u32 %v523, 7
    %v525 = vsub.s32 0, %v524
    %v526 = vrot.slane %v521, %v525
    %v528 = vmul.f32 %v306, %v526
    %v529 = vadd.f32 %v520, %v528
    %s530 = scalar_lea.vmem %s0, 24
    %v531 = vld [vmem:[%s530] sm:$0x1f]
    %s532 = scalar_lea.vmem %s2, 3
    %v533 = vld [vmem:[%s532] sm:$0x1]
    %s534 = scalar_lea.vmem %s1, 3
    %v535 = vld [vmem:[%s534] sm:$0x1]
    %v536 = vlaneseq
    %v537 = vshrl.u32 %v536, 7
    %v538 = vsub.s32 0, %v537
    %v539 = vrot.slane %v535, %v538
    %vm540 = vcmp.eq.s32.totalorder %v32, %v539
    %v541 = vsel %vm540, 1, 0
    %v542 = vcvt.s32.f32 %v541
    %v544 = vcombine.high %v319, %v319
    %v546 = vunpack.c.l.s4 1966171168
    %v547 = vunpack.c.0.s8 %v546
    %v548 = vlaneseq
    %v549 = vshrl.u32 %v548, 7
    %v550 = vsub.s32 %v547, %v549
    %v551 = vrot.slane %v319, %v550
    %v553 = vunpack.c.l.s4 1966171168
    %v554 = vunpack.c.0.s8 %v553
    %v555 = vlaneseq
    %v556 = vshrl.u32 %v555, 7
    %v557 = vsub.s32 %v554, %v556
    %v558 = vrot.slane %v544, %v557
    %v559 = vcombine.high %v551, %v551
    %v561 = vunpack.c.l.s4 1966171168
    %v562 = vunpack.c.0.s8 %v561
    %v563 = vlaneseq
    %v564 = vshrl.u32 %v563, 7
    %v565 = vsub.s32 %v562, %v564
    %v566 = vrot.slane %v551, %v565
    %v568 = vunpack.c.l.s4 1966171168
    %v569 = vunpack.c.0.s8 %v568
    %v570 = vlaneseq
    %v571 = vshrl.u32 %v570, 7
    %v572 = vsub.s32 %v569, %v571
    %v573 = vrot.slane %v558, %v572
    %v575 = vunpack.c.l.s4 1966171168
    %v576 = vunpack.c.0.s8 %v575
    %v577 = vlaneseq
    %v578 = vshrl.u32 %v577, 7
    %v579 = vsub.s32 %v576, %v578
    %v580 = vrot.slane %v559, %v579
    %v581 = vcombine.high %v566, %v566
    %v582 = vcombine.high %v580, %v580
    %v583 = vlaneseq
    %v584 = vshrl.u32 %v583, 7
    %v585 = vsub.s32 0, %v584
    %v586 = vrot.slane %v566, %v585
    %v587 = vlaneseq
    %v588 = vshrl.u32 %v587, 7
    %v589 = vsub.s32 0, %v588
    %v590 = vrot.slane %v580, %v589
    %v591 = vlaneseq
    %v592 = vshrl.u32 %v591, 7
    %v593 = vsub.s32 0, %v592
    %v594 = vrot.slane %v581, %v593
    %v595 = vlaneseq
    %v596 = vshrl.u32 %v595, 7
    %v597 = vsub.s32 0, %v596
    %v598 = vrot.slane %v582, %v597
    %v599 = vlaneseq
    %v600 = vshrl.u32 %v599, 7
    %v601 = vsub.s32 0, %v600
    %v602 = vrot.slane %v573, %v601
    %v608 = vmul.f32 %v114, %v586
    %v609 = vmul.f32 %v119, %v590
    %v610 = vmul.f32 %v124, %v594
    %v611 = vmul.f32 %v129, %v598
    %v612 = vmul.f32 %v134, %v602
    %v613 = vsel %vm166, %v608, 0.0
    %v614 = vsel %vm166, %v609, 0.0
    %v615 = vadd.f32 %v613, %v614
    %v616 = vsel %vm166, %v610, 0.0
    %v617 = vadd.f32 %v615, %v616
    %v618 = vsel %vm166, %v611, 0.0
    %v619 = vadd.f32 %v617, %v618
    %v620 = vsel %vm166, %v612, 0.0
    %v621 = vadd.f32 %v619, %v620
    %v622 = vadd.f32 %v531, %v621
    %v623 = vmul.f32 %v542, %v622
    %v625 = vlaneseq
    %v626 = vshrl.u32 %v625, 7
    %v627 = vsub.s32 0, %v626
    %v628 = vrot.slane %v533, %v627
    %v630 = vmul.f32 %v623, %v628
    %v631 = vadd.f32 %v408, %v630
    %v633 = vcombine.high %v529, %v529
    %v635 = vunpack.c.l.s4 1966171168
    %v636 = vunpack.c.0.s8 %v635
    %v637 = vlaneseq
    %v638 = vshrl.u32 %v637, 7
    %v639 = vsub.s32 %v636, %v638
    %v640 = vrot.slane %v529, %v639
    %v642 = vunpack.c.l.s4 1966171168
    %v643 = vunpack.c.0.s8 %v642
    %v644 = vlaneseq
    %v645 = vshrl.u32 %v644, 7
    %v646 = vsub.s32 %v643, %v645
    %v647 = vrot.slane %v633, %v646
    %v648 = vcombine.high %v640, %v640
    %v650 = vunpack.c.l.s4 1966171168
    %v651 = vunpack.c.0.s8 %v650
    %v652 = vlaneseq
    %v653 = vshrl.u32 %v652, 7
    %v654 = vsub.s32 %v651, %v653
    %v655 = vrot.slane %v640, %v654
    %v657 = vunpack.c.l.s4 1966171168
    %v658 = vunpack.c.0.s8 %v657
    %v659 = vlaneseq
    %v660 = vshrl.u32 %v659, 7
    %v661 = vsub.s32 %v658, %v660
    %v662 = vrot.slane %v647, %v661
    %v664 = vunpack.c.l.s4 1966171168
    %v665 = vunpack.c.0.s8 %v664
    %v666 = vlaneseq
    %v667 = vshrl.u32 %v666, 7
    %v668 = vsub.s32 %v665, %v667
    %v669 = vrot.slane %v648, %v668
    %v670 = vcombine.high %v655, %v655
    %v671 = vcombine.high %v669, %v669
    %v672 = vlaneseq
    %v673 = vshrl.u32 %v672, 7
    %v674 = vsub.s32 0, %v673
    %v675 = vrot.slane %v655, %v674
    %v676 = vlaneseq
    %v677 = vshrl.u32 %v676, 7
    %v678 = vsub.s32 0, %v677
    %v679 = vrot.slane %v669, %v678
    %v680 = vlaneseq
    %v681 = vshrl.u32 %v680, 7
    %v682 = vsub.s32 0, %v681
    %v683 = vrot.slane %v670, %v682
    %v684 = vlaneseq
    %v685 = vshrl.u32 %v684, 7
    %v686 = vsub.s32 0, %v685
    %v687 = vrot.slane %v671, %v686
    %v688 = vlaneseq
    %v689 = vshrl.u32 %v688, 7
    %v690 = vsub.s32 0, %v689
    %v691 = vrot.slane %v662, %v690
    %v697 = vadd.f32 %v675, %v531
    %v698 = vadd.f32 %v679, %v531
    %v699 = vadd.f32 %v683, %v531
    %v700 = vadd.f32 %v687, %v531
    %v701 = vadd.f32 %v691, %v531
    %v702 = vadd.f32 %v697, %v114
    %v703 = vadd.f32 %v698, %v119
    %v704 = vadd.f32 %v699, %v124
    %v705 = vadd.f32 %v700, %v129
    %v706 = vadd.f32 %v701, %v134
    %v707 = vsel %vm166, %v702, -inf
    %v708 = vsel %vm166, %v703, -inf
    %v709 = vsel %vm166, %v704, -inf
    %v710 = vsel %vm166, %v705, -inf
    %v711 = vsel %vm166, %v706, -inf
    %v712 = vmax.f32 %v707, %v711
    %v713 = vmax.f32 %v712, %v708
    %v714 = vmax.f32 %v709, %v710
    %v715 = vmax.f32 %v713, %v714
    %v716 = vsub.f32 %v702, %v715
    %v717 = vsub.f32 %v703, %v715
    %v718 = vsub.f32 %v704, %v715
    %v719 = vsub.f32 %v705, %v715
    %v720 = vsub.f32 %v706, %v715
    %v721 = vmul.f32 %v716, 1.442695
    %v722 = vpow.pop %v721
    %v723 = vmul.f32 %v717, 1.442695
    %v724 = vpow.pop %v723
    %v725 = vmul.f32 %v718, 1.442695
    %v726 = vpow.pop %v725
    %v727 = vmul.f32 %v719, 1.442695
    %v728 = vpow.pop %v727
    %v729 = vmul.f32 %v720, 1.442695
    %v730 = vpow.pop %v729
    %v731 = vsel %vm166, %v722, 0.0
    %v732 = vsel %vm166, %v724, 0.0
    %v733 = vadd.f32 %v731, %v732
    %v734 = vsel %vm166, %v726, 0.0
    %v735 = vadd.f32 %v733, %v734
    %v736 = vsel %vm166, %v728, 0.0
    %v737 = vadd.f32 %v735, %v736
    %v738 = vsel %vm166, %v730, 0.0
    %v739 = vadd.f32 %v737, %v738
    %v740 = vlog2.pop %v739
    %v741 = vmul.f32 %v740, 0.6931472
    %v742 = vadd.f32 %v715, %v741
    %v743 = vmul.f32 %v742, %v628
    %v744 = vsub.f32 1.0, %v533
    %v746 = vlaneseq
    %v747 = vshrl.u32 %v746, 7
    %v748 = vsub.s32 0, %v747
    %v749 = vrot.slane %v744, %v748
    %v751 = vmul.f32 %v529, %v749
    %v752 = vadd.f32 %v743, %v751
    %s753 = scalar_lea.vmem %s0, 32
    %v754 = vld [vmem:[%s753] sm:$0x1f]
    %s755 = scalar_lea.vmem %s2, 4
    %v756 = vld [vmem:[%s755] sm:$0x1]
    %s757 = scalar_lea.vmem %s1, 4
    %v758 = vld [vmem:[%s757] sm:$0x1]
    %v759 = vlaneseq
    %v760 = vshrl.u32 %v759, 7
    %v761 = vsub.s32 0, %v760
    %v762 = vrot.slane %v758, %v761
    %vm763 = vcmp.eq.s32.totalorder %v32, %v762
    %v764 = vsel %vm763, 1, 0
    %v765 = vcvt.s32.f32 %v764
    %v767 = vcombine.high %v542, %v542
    %v769 = vunpack.c.l.s4 1966171168
    %v770 = vunpack.c.0.s8 %v769
    %v771 = vlaneseq
    %v772 = vshrl.u32 %v771, 7
    %v773 = vsub.s32 %v770, %v772
    %v774 = vrot.slane %v542, %v773
    %v776 = vunpack.c.l.s4 1966171168
    %v777 = vunpack.c.0.s8 %v776
    %v778 = vlaneseq
    %v779 = vshrl.u32 %v778, 7
    %v780 = vsub.s32 %v777, %v779
    %v781 = vrot.slane %v767, %v780
    %v782 = vcombine.high %v774, %v774
    %v784 = vunpack.c.l.s4 1966171168
    %v785 = vunpack.c.0.s8 %v784
    %v786 = vlaneseq
    %v787 = vshrl.u32 %v786, 7
    %v788 = vsub.s32 %v785, %v787
    %v789 = vrot.slane %v774, %v788
    %v791 = vunpack.c.l.s4 1966171168
    %v792 = vunpack.c.0.s8 %v791
    %v793 = vlaneseq
    %v794 = vshrl.u32 %v793, 7
    %v795 = vsub.s32 %v792, %v794
    %v796 = vrot.slane %v781, %v795
    %v798 = vunpack.c.l.s4 1966171168
    %v799 = vunpack.c.0.s8 %v798
    %v800 = vlaneseq
    %v801 = vshrl.u32 %v800, 7
    %v802 = vsub.s32 %v799, %v801
    %v803 = vrot.slane %v782, %v802
    %v804 = vcombine.high %v789, %v789
    %v805 = vcombine.high %v803, %v803
    %v806 = vlaneseq
    %v807 = vshrl.u32 %v806, 7
    %v808 = vsub.s32 0, %v807
    %v809 = vrot.slane %v789, %v808
    %v810 = vlaneseq
    %v811 = vshrl.u32 %v810, 7
    %v812 = vsub.s32 0, %v811
    %v813 = vrot.slane %v803, %v812
    %v814 = vlaneseq
    %v815 = vshrl.u32 %v814, 7
    %v816 = vsub.s32 0, %v815
    %v817 = vrot.slane %v804, %v816
    %v818 = vlaneseq
    %v819 = vshrl.u32 %v818, 7
    %v820 = vsub.s32 0, %v819
    %v821 = vrot.slane %v805, %v820
    %v822 = vlaneseq
    %v823 = vshrl.u32 %v822, 7
    %v824 = vsub.s32 0, %v823
    %v825 = vrot.slane %v796, %v824
    %v831 = vmul.f32 %v114, %v809
    %v832 = vmul.f32 %v119, %v813
    %v833 = vmul.f32 %v124, %v817
    %v834 = vmul.f32 %v129, %v821
    %v835 = vmul.f32 %v134, %v825
    %v836 = vsel %vm166, %v831, 0.0
    %v837 = vsel %vm166, %v832, 0.0
    %v838 = vadd.f32 %v836, %v837
    %v839 = vsel %vm166, %v833, 0.0
    %v840 = vadd.f32 %v838, %v839
    %v841 = vsel %vm166, %v834, 0.0
    %v842 = vadd.f32 %v840, %v841
    %v843 = vsel %vm166, %v835, 0.0
    %v844 = vadd.f32 %v842, %v843
    %v845 = vadd.f32 %v754, %v844
    %v846 = vmul.f32 %v765, %v845
    %v848 = vlaneseq
    %v849 = vshrl.u32 %v848, 7
    %v850 = vsub.s32 0, %v849
    %v851 = vrot.slane %v756, %v850
    %v853 = vmul.f32 %v846, %v851
    %v854 = vadd.f32 %v631, %v853
    %v856 = vcombine.high %v752, %v752
    %v858 = vunpack.c.l.s4 1966171168
    %v859 = vunpack.c.0.s8 %v858
    %v860 = vlaneseq
    %v861 = vshrl.u32 %v860, 7
    %v862 = vsub.s32 %v859, %v861
    %v863 = vrot.slane %v752, %v862
    %v865 = vunpack.c.l.s4 1966171168
    %v866 = vunpack.c.0.s8 %v865
    %v867 = vlaneseq
    %v868 = vshrl.u32 %v867, 7
    %v869 = vsub.s32 %v866, %v868
    %v870 = vrot.slane %v856, %v869
    %v871 = vcombine.high %v863, %v863
    %v873 = vunpack.c.l.s4 1966171168
    %v874 = vunpack.c.0.s8 %v873
    %v875 = vlaneseq
    %v876 = vshrl.u32 %v875, 7
    %v877 = vsub.s32 %v874, %v876
    %v878 = vrot.slane %v863, %v877
    %v880 = vunpack.c.l.s4 1966171168
    %v881 = vunpack.c.0.s8 %v880
    %v882 = vlaneseq
    %v883 = vshrl.u32 %v882, 7
    %v884 = vsub.s32 %v881, %v883
    %v885 = vrot.slane %v870, %v884
    %v887 = vunpack.c.l.s4 1966171168
    %v888 = vunpack.c.0.s8 %v887
    %v889 = vlaneseq
    %v890 = vshrl.u32 %v889, 7
    %v891 = vsub.s32 %v888, %v890
    %v892 = vrot.slane %v871, %v891
    %v893 = vcombine.high %v878, %v878
    %v894 = vcombine.high %v892, %v892
    %v895 = vlaneseq
    %v896 = vshrl.u32 %v895, 7
    %v897 = vsub.s32 0, %v896
    %v898 = vrot.slane %v878, %v897
    %v899 = vlaneseq
    %v900 = vshrl.u32 %v899, 7
    %v901 = vsub.s32 0, %v900
    %v902 = vrot.slane %v892, %v901
    %v903 = vlaneseq
    %v904 = vshrl.u32 %v903, 7
    %v905 = vsub.s32 0, %v904
    %v906 = vrot.slane %v893, %v905
    %v907 = vlaneseq
    %v908 = vshrl.u32 %v907, 7
    %v909 = vsub.s32 0, %v908
    %v910 = vrot.slane %v894, %v909
    %v911 = vlaneseq
    %v912 = vshrl.u32 %v911, 7
    %v913 = vsub.s32 0, %v912
    %v914 = vrot.slane %v885, %v913
    %v920 = vadd.f32 %v898, %v754
    %v921 = vadd.f32 %v902, %v754
    %v922 = vadd.f32 %v906, %v754
    %v923 = vadd.f32 %v910, %v754
    %v924 = vadd.f32 %v914, %v754
    %v925 = vadd.f32 %v920, %v114
    %v926 = vadd.f32 %v921, %v119
    %v927 = vadd.f32 %v922, %v124
    %v928 = vadd.f32 %v923, %v129
    %v929 = vadd.f32 %v924, %v134
    %v930 = vsel %vm166, %v925, -inf
    %v931 = vsel %vm166, %v926, -inf
    %v932 = vsel %vm166, %v927, -inf
    %v933 = vsel %vm166, %v928, -inf
    %v934 = vsel %vm166, %v929, -inf
    %v935 = vmax.f32 %v930, %v934
    %v936 = vmax.f32 %v935, %v931
    %v937 = vmax.f32 %v932, %v933
    %v938 = vmax.f32 %v936, %v937
    %v939 = vsub.f32 %v925, %v938
    %v940 = vsub.f32 %v926, %v938
    %v941 = vsub.f32 %v927, %v938
    %v942 = vsub.f32 %v928, %v938
    %v943 = vsub.f32 %v929, %v938
    %v944 = vmul.f32 %v939, 1.442695
    %v945 = vpow.pop %v944
    %v946 = vmul.f32 %v940, 1.442695
    %v947 = vpow.pop %v946
    %v948 = vmul.f32 %v941, 1.442695
    %v949 = vpow.pop %v948
    %v950 = vmul.f32 %v942, 1.442695
    %v951 = vpow.pop %v950
    %v952 = vmul.f32 %v943, 1.442695
    %v953 = vpow.pop %v952
    %v954 = vsel %vm166, %v945, 0.0
    %v955 = vsel %vm166, %v947, 0.0
    %v956 = vadd.f32 %v954, %v955
    %v957 = vsel %vm166, %v949, 0.0
    %v958 = vadd.f32 %v956, %v957
    %v959 = vsel %vm166, %v951, 0.0
    %v960 = vadd.f32 %v958, %v959
    %v961 = vsel %vm166, %v953, 0.0
    %v962 = vadd.f32 %v960, %v961
    %v963 = vlog2.pop %v962
    %v964 = vmul.f32 %v963, 0.6931472
    %v965 = vadd.f32 %v938, %v964
    %v966 = vmul.f32 %v965, %v851
    %v967 = vsub.f32 1.0, %v756
    %v969 = vlaneseq
    %v970 = vshrl.u32 %v969, 7
    %v971 = vsub.s32 0, %v970
    %v972 = vrot.slane %v967, %v971
    %v974 = vmul.f32 %v752, %v972
    %v975 = vadd.f32 %v966, %v974
    %s976 = scalar_lea.vmem %s0, 40
    %v977 = vld [vmem:[%s976] sm:$0x1f]
    %s978 = scalar_lea.vmem %s2, 5
    %v979 = vld [vmem:[%s978] sm:$0x1]
    %s980 = scalar_lea.vmem %s1, 5
    %v981 = vld [vmem:[%s980] sm:$0x1]
    %v982 = vlaneseq
    %v983 = vshrl.u32 %v982, 7
    %v984 = vsub.s32 0, %v983
    %v985 = vrot.slane %v981, %v984
    %vm986 = vcmp.eq.s32.totalorder %v32, %v985
    %v987 = vsel %vm986, 1, 0
    %v988 = vcvt.s32.f32 %v987
    %v990 = vcombine.high %v765, %v765
    %v992 = vunpack.c.l.s4 1966171168
    %v993 = vunpack.c.0.s8 %v992
    %v994 = vlaneseq
    %v995 = vshrl.u32 %v994, 7
    %v996 = vsub.s32 %v993, %v995
    %v997 = vrot.slane %v765, %v996
    %v999 = vunpack.c.l.s4 1966171168
    %v1000 = vunpack.c.0.s8 %v999
    %v1001 = vlaneseq
    %v1002 = vshrl.u32 %v1001, 7
    %v1003 = vsub.s32 %v1000, %v1002
    %v1004 = vrot.slane %v990, %v1003
    %v1005 = vcombine.high %v997, %v997
    %v1007 = vunpack.c.l.s4 1966171168
    %v1008 = vunpack.c.0.s8 %v1007
    %v1009 = vlaneseq
    %v1010 = vshrl.u32 %v1009, 7
    %v1011 = vsub.s32 %v1008, %v1010
    %v1012 = vrot.slane %v997, %v1011
    %v1014 = vunpack.c.l.s4 1966171168
    %v1015 = vunpack.c.0.s8 %v1014
    %v1016 = vlaneseq
    %v1017 = vshrl.u32 %v1016, 7
    %v1018 = vsub.s32 %v1015, %v1017
    %v1019 = vrot.slane %v1004, %v1018
    %v1021 = vunpack.c.l.s4 1966171168
    %v1022 = vunpack.c.0.s8 %v1021
    %v1023 = vlaneseq
    %v1024 = vshrl.u32 %v1023, 7
    %v1025 = vsub.s32 %v1022, %v1024
    %v1026 = vrot.slane %v1005, %v1025
    %v1027 = vcombine.high %v1012, %v1012
    %v1028 = vcombine.high %v1026, %v1026
    %v1029 = vlaneseq
    %v1030 = vshrl.u32 %v1029, 7
    %v1031 = vsub.s32 0, %v1030
    %v1032 = vrot.slane %v1012, %v1031
    %v1033 = vlaneseq
    %v1034 = vshrl.u32 %v1033, 7
    %v1035 = vsub.s32 0, %v1034
    %v1036 = vrot.slane %v1026, %v1035
    %v1037 = vlaneseq
    %v1038 = vshrl.u32 %v1037, 7
    %v1039 = vsub.s32 0, %v1038
    %v1040 = vrot.slane %v1027, %v1039
    %v1041 = vlaneseq
    %v1042 = vshrl.u32 %v1041, 7
    %v1043 = vsub.s32 0, %v1042
    %v1044 = vrot.slane %v1028, %v1043
    %v1045 = vlaneseq
    %v1046 = vshrl.u32 %v1045, 7
    %v1047 = vsub.s32 0, %v1046
    %v1048 = vrot.slane %v1019, %v1047
    %v1054 = vmul.f32 %v114, %v1032
    %v1055 = vmul.f32 %v119, %v1036
    %v1056 = vmul.f32 %v124, %v1040
    %v1057 = vmul.f32 %v129, %v1044
    %v1058 = vmul.f32 %v134, %v1048
    %v1059 = vsel %vm166, %v1054, 0.0
    %v1060 = vsel %vm166, %v1055, 0.0
    %v1061 = vadd.f32 %v1059, %v1060
    %v1062 = vsel %vm166, %v1056, 0.0
    %v1063 = vadd.f32 %v1061, %v1062
    %v1064 = vsel %vm166, %v1057, 0.0
    %v1065 = vadd.f32 %v1063, %v1064
    %v1066 = vsel %vm166, %v1058, 0.0
    %v1067 = vadd.f32 %v1065, %v1066
    %v1068 = vadd.f32 %v977, %v1067
    %v1069 = vmul.f32 %v988, %v1068
    %v1071 = vlaneseq
    %v1072 = vshrl.u32 %v1071, 7
    %v1073 = vsub.s32 0, %v1072
    %v1074 = vrot.slane %v979, %v1073
    %v1076 = vmul.f32 %v1069, %v1074
    %v1077 = vadd.f32 %v854, %v1076
    %v1079 = vcombine.high %v975, %v975
    %v1081 = vunpack.c.l.s4 1966171168
    %v1082 = vunpack.c.0.s8 %v1081
    %v1083 = vlaneseq
    %v1084 = vshrl.u32 %v1083, 7
    %v1085 = vsub.s32 %v1082, %v1084
    %v1086 = vrot.slane %v975, %v1085
    %v1088 = vunpack.c.l.s4 1966171168
    %v1089 = vunpack.c.0.s8 %v1088
    %v1090 = vlaneseq
    %v1091 = vshrl.u32 %v1090, 7
    %v1092 = vsub.s32 %v1089, %v1091
    %v1093 = vrot.slane %v1079, %v1092
    %v1094 = vcombine.high %v1086, %v1086
    %v1096 = vunpack.c.l.s4 1966171168
    %v1097 = vunpack.c.0.s8 %v1096
    %v1098 = vlaneseq
    %v1099 = vshrl.u32 %v1098, 7
    %v1100 = vsub.s32 %v1097, %v1099
    %v1101 = vrot.slane %v1086, %v1100
    %v1103 = vunpack.c.l.s4 1966171168
    %v1104 = vunpack.c.0.s8 %v1103
    %v1105 = vlaneseq
    %v1106 = vshrl.u32 %v1105, 7
    %v1107 = vsub.s32 %v1104, %v1106
    %v1108 = vrot.slane %v1093, %v1107
    %v1110 = vunpack.c.l.s4 1966171168
    %v1111 = vunpack.c.0.s8 %v1110
    %v1112 = vlaneseq
    %v1113 = vshrl.u32 %v1112, 7
    %v1114 = vsub.s32 %v1111, %v1113
    %v1115 = vrot.slane %v1094, %v1114
    %v1116 = vcombine.high %v1101, %v1101
    %v1117 = vcombine.high %v1115, %v1115
    %v1118 = vlaneseq
    %v1119 = vshrl.u32 %v1118, 7
    %v1120 = vsub.s32 0, %v1119
    %v1121 = vrot.slane %v1101, %v1120
    %v1122 = vlaneseq
    %v1123 = vshrl.u32 %v1122, 7
    %v1124 = vsub.s32 0, %v1123
    %v1125 = vrot.slane %v1115, %v1124
    %v1126 = vlaneseq
    %v1127 = vshrl.u32 %v1126, 7
    %v1128 = vsub.s32 0, %v1127
    %v1129 = vrot.slane %v1116, %v1128
    %v1130 = vlaneseq
    %v1131 = vshrl.u32 %v1130, 7
    %v1132 = vsub.s32 0, %v1131
    %v1133 = vrot.slane %v1117, %v1132
    %v1134 = vlaneseq
    %v1135 = vshrl.u32 %v1134, 7
    %v1136 = vsub.s32 0, %v1135
    %v1137 = vrot.slane %v1108, %v1136
    %v1143 = vadd.f32 %v1121, %v977
    %v1144 = vadd.f32 %v1125, %v977
    %v1145 = vadd.f32 %v1129, %v977
    %v1146 = vadd.f32 %v1133, %v977
    %v1147 = vadd.f32 %v1137, %v977
    %v1148 = vadd.f32 %v1143, %v114
    %v1149 = vadd.f32 %v1144, %v119
    %v1150 = vadd.f32 %v1145, %v124
    %v1151 = vadd.f32 %v1146, %v129
    %v1152 = vadd.f32 %v1147, %v134
    %v1153 = vsel %vm166, %v1148, -inf
    %v1154 = vsel %vm166, %v1149, -inf
    %v1155 = vsel %vm166, %v1150, -inf
    %v1156 = vsel %vm166, %v1151, -inf
    %v1157 = vsel %vm166, %v1152, -inf
    %v1158 = vmax.f32 %v1153, %v1157
    %v1159 = vmax.f32 %v1158, %v1154
    %v1160 = vmax.f32 %v1155, %v1156
    %v1161 = vmax.f32 %v1159, %v1160
    %v1162 = vsub.f32 %v1148, %v1161
    %v1163 = vsub.f32 %v1149, %v1161
    %v1164 = vsub.f32 %v1150, %v1161
    %v1165 = vsub.f32 %v1151, %v1161
    %v1166 = vsub.f32 %v1152, %v1161
    %v1167 = vmul.f32 %v1162, 1.442695
    %v1168 = vpow.pop %v1167
    %v1169 = vmul.f32 %v1163, 1.442695
    %v1170 = vpow.pop %v1169
    %v1171 = vmul.f32 %v1164, 1.442695
    %v1172 = vpow.pop %v1171
    %v1173 = vmul.f32 %v1165, 1.442695
    %v1174 = vpow.pop %v1173
    %v1175 = vmul.f32 %v1166, 1.442695
    %v1176 = vpow.pop %v1175
    %v1177 = vsel %vm166, %v1168, 0.0
    %v1178 = vsel %vm166, %v1170, 0.0
    %v1179 = vadd.f32 %v1177, %v1178
    %v1180 = vsel %vm166, %v1172, 0.0
    %v1181 = vadd.f32 %v1179, %v1180
    %v1182 = vsel %vm166, %v1174, 0.0
    %v1183 = vadd.f32 %v1181, %v1182
    %v1184 = vsel %vm166, %v1176, 0.0
    %v1185 = vadd.f32 %v1183, %v1184
    %v1186 = vlog2.pop %v1185
    %v1187 = vmul.f32 %v1186, 0.6931472
    %v1188 = vadd.f32 %v1161, %v1187
    %v1189 = vmul.f32 %v1188, %v1074
    %v1190 = vsub.f32 1.0, %v979
    %v1192 = vlaneseq
    %v1193 = vshrl.u32 %v1192, 7
    %v1194 = vsub.s32 0, %v1193
    %v1195 = vrot.slane %v1190, %v1194
    %v1197 = vmul.f32 %v975, %v1195
    %v1198 = vadd.f32 %v1189, %v1197
    %s1199 = scalar_lea.vmem %s0, 48
    %v1200 = vld [vmem:[%s1199] sm:$0x1f]
    %s1201 = scalar_lea.vmem %s2, 6
    %v1202 = vld [vmem:[%s1201] sm:$0x1]
    %s1203 = scalar_lea.vmem %s1, 6
    %v1204 = vld [vmem:[%s1203] sm:$0x1]
    %v1205 = vlaneseq
    %v1206 = vshrl.u32 %v1205, 7
    %v1207 = vsub.s32 0, %v1206
    %v1208 = vrot.slane %v1204, %v1207
    %vm1209 = vcmp.eq.s32.totalorder %v32, %v1208
    %v1210 = vsel %vm1209, 1, 0
    %v1211 = vcvt.s32.f32 %v1210
    %v1213 = vcombine.high %v988, %v988
    %v1215 = vunpack.c.l.s4 1966171168
    %v1216 = vunpack.c.0.s8 %v1215
    %v1217 = vlaneseq
    %v1218 = vshrl.u32 %v1217, 7
    %v1219 = vsub.s32 %v1216, %v1218
    %v1220 = vrot.slane %v988, %v1219
    %v1222 = vunpack.c.l.s4 1966171168
    %v1223 = vunpack.c.0.s8 %v1222
    %v1224 = vlaneseq
    %v1225 = vshrl.u32 %v1224, 7
    %v1226 = vsub.s32 %v1223, %v1225
    %v1227 = vrot.slane %v1213, %v1226
    %v1228 = vcombine.high %v1220, %v1220
    %v1230 = vunpack.c.l.s4 1966171168
    %v1231 = vunpack.c.0.s8 %v1230
    %v1232 = vlaneseq
    %v1233 = vshrl.u32 %v1232, 7
    %v1234 = vsub.s32 %v1231, %v1233
    %v1235 = vrot.slane %v1220, %v1234
    %v1237 = vunpack.c.l.s4 1966171168
    %v1238 = vunpack.c.0.s8 %v1237
    %v1239 = vlaneseq
    %v1240 = vshrl.u32 %v1239, 7
    %v1241 = vsub.s32 %v1238, %v1240
    %v1242 = vrot.slane %v1227, %v1241
    %v1244 = vunpack.c.l.s4 1966171168
    %v1245 = vunpack.c.0.s8 %v1244
    %v1246 = vlaneseq
    %v1247 = vshrl.u32 %v1246, 7
    %v1248 = vsub.s32 %v1245, %v1247
    %v1249 = vrot.slane %v1228, %v1248
    %v1250 = vcombine.high %v1235, %v1235
    %v1251 = vcombine.high %v1249, %v1249
    %v1252 = vlaneseq
    %v1253 = vshrl.u32 %v1252, 7
    %v1254 = vsub.s32 0, %v1253
    %v1255 = vrot.slane %v1235, %v1254
    %v1256 = vlaneseq
    %v1257 = vshrl.u32 %v1256, 7
    %v1258 = vsub.s32 0, %v1257
    %v1259 = vrot.slane %v1249, %v1258
    %v1260 = vlaneseq
    %v1261 = vshrl.u32 %v1260, 7
    %v1262 = vsub.s32 0, %v1261
    %v1263 = vrot.slane %v1250, %v1262
    %v1264 = vlaneseq
    %v1265 = vshrl.u32 %v1264, 7
    %v1266 = vsub.s32 0, %v1265
    %v1267 = vrot.slane %v1251, %v1266
    %v1268 = vlaneseq
    %v1269 = vshrl.u32 %v1268, 7
    %v1270 = vsub.s32 0, %v1269
    %v1271 = vrot.slane %v1242, %v1270
    %v1277 = vmul.f32 %v114, %v1255
    %v1278 = vmul.f32 %v119, %v1259
    %v1279 = vmul.f32 %v124, %v1263
    %v1280 = vmul.f32 %v129, %v1267
    %v1281 = vmul.f32 %v134, %v1271
    %v1282 = vsel %vm166, %v1277, 0.0
    %v1283 = vsel %vm166, %v1278, 0.0
    %v1284 = vadd.f32 %v1282, %v1283
    %v1285 = vsel %vm166, %v1279, 0.0
    %v1286 = vadd.f32 %v1284, %v1285
    %v1287 = vsel %vm166, %v1280, 0.0
    %v1288 = vadd.f32 %v1286, %v1287
    %v1289 = vsel %vm166, %v1281, 0.0
    %v1290 = vadd.f32 %v1288, %v1289
    %v1291 = vadd.f32 %v1200, %v1290
    %v1292 = vmul.f32 %v1211, %v1291
    %v1294 = vlaneseq
    %v1295 = vshrl.u32 %v1294, 7
    %v1296 = vsub.s32 0, %v1295
    %v1297 = vrot.slane %v1202, %v1296
    %v1299 = vmul.f32 %v1292, %v1297
    %v1300 = vadd.f32 %v1077, %v1299
    %v1302 = vcombine.high %v1198, %v1198
    %v1304 = vunpack.c.l.s4 1966171168
    %v1305 = vunpack.c.0.s8 %v1304
    %v1306 = vlaneseq
    %v1307 = vshrl.u32 %v1306, 7
    %v1308 = vsub.s32 %v1305, %v1307
    %v1309 = vrot.slane %v1198, %v1308
    %v1311 = vunpack.c.l.s4 1966171168
    %v1312 = vunpack.c.0.s8 %v1311
    %v1313 = vlaneseq
    %v1314 = vshrl.u32 %v1313, 7
    %v1315 = vsub.s32 %v1312, %v1314
    %v1316 = vrot.slane %v1302, %v1315
    %v1317 = vcombine.high %v1309, %v1309
    %v1319 = vunpack.c.l.s4 1966171168
    %v1320 = vunpack.c.0.s8 %v1319
    %v1321 = vlaneseq
    %v1322 = vshrl.u32 %v1321, 7
    %v1323 = vsub.s32 %v1320, %v1322
    %v1324 = vrot.slane %v1309, %v1323
    %v1326 = vunpack.c.l.s4 1966171168
    %v1327 = vunpack.c.0.s8 %v1326
    %v1328 = vlaneseq
    %v1329 = vshrl.u32 %v1328, 7
    %v1330 = vsub.s32 %v1327, %v1329
    %v1331 = vrot.slane %v1316, %v1330
    %v1333 = vunpack.c.l.s4 1966171168
    %v1334 = vunpack.c.0.s8 %v1333
    %v1335 = vlaneseq
    %v1336 = vshrl.u32 %v1335, 7
    %v1337 = vsub.s32 %v1334, %v1336
    %v1338 = vrot.slane %v1317, %v1337
    %v1339 = vcombine.high %v1324, %v1324
    %v1340 = vcombine.high %v1338, %v1338
    %v1341 = vlaneseq
    %v1342 = vshrl.u32 %v1341, 7
    %v1343 = vsub.s32 0, %v1342
    %v1344 = vrot.slane %v1324, %v1343
    %v1345 = vlaneseq
    %v1346 = vshrl.u32 %v1345, 7
    %v1347 = vsub.s32 0, %v1346
    %v1348 = vrot.slane %v1338, %v1347
    %v1349 = vlaneseq
    %v1350 = vshrl.u32 %v1349, 7
    %v1351 = vsub.s32 0, %v1350
    %v1352 = vrot.slane %v1339, %v1351
    %v1353 = vlaneseq
    %v1354 = vshrl.u32 %v1353, 7
    %v1355 = vsub.s32 0, %v1354
    %v1356 = vrot.slane %v1340, %v1355
    %v1357 = vlaneseq
    %v1358 = vshrl.u32 %v1357, 7
    %v1359 = vsub.s32 0, %v1358
    %v1360 = vrot.slane %v1331, %v1359
    %v1366 = vadd.f32 %v1344, %v1200
    %v1367 = vadd.f32 %v1348, %v1200
    %v1368 = vadd.f32 %v1352, %v1200
    %v1369 = vadd.f32 %v1356, %v1200
    %v1370 = vadd.f32 %v1360, %v1200
    %v1371 = vadd.f32 %v1366, %v114
    %v1372 = vadd.f32 %v1367, %v119
    %v1373 = vadd.f32 %v1368, %v124
    %v1374 = vadd.f32 %v1369, %v129
    %v1375 = vadd.f32 %v1370, %v134
    %v1376 = vsel %vm166, %v1371, -inf
    %v1377 = vsel %vm166, %v1372, -inf
    %v1378 = vsel %vm166, %v1373, -inf
    %v1379 = vsel %vm166, %v1374, -inf
    %v1380 = vsel %vm166, %v1375, -inf
    %v1381 = vmax.f32 %v1376, %v1380
    %v1382 = vmax.f32 %v1381, %v1377
    %v1383 = vmax.f32 %v1378, %v1379
    %v1384 = vmax.f32 %v1382, %v1383
    %v1385 = vsub.f32 %v1371, %v1384
    %v1386 = vsub.f32 %v1372, %v1384
    %v1387 = vsub.f32 %v1373, %v1384
    %v1388 = vsub.f32 %v1374, %v1384
    %v1389 = vsub.f32 %v1375, %v1384
    %v1390 = vmul.f32 %v1385, 1.442695
    %v1391 = vpow.pop %v1390
    %v1392 = vmul.f32 %v1386, 1.442695
    %v1393 = vpow.pop %v1392
    %v1394 = vmul.f32 %v1387, 1.442695
    %v1395 = vpow.pop %v1394
    %v1396 = vmul.f32 %v1388, 1.442695
    %v1397 = vpow.pop %v1396
    %v1398 = vmul.f32 %v1389, 1.442695
    %v1399 = vpow.pop %v1398
    %v1400 = vsel %vm166, %v1391, 0.0
    %v1401 = vsel %vm166, %v1393, 0.0
    %v1402 = vadd.f32 %v1400, %v1401
    %v1403 = vsel %vm166, %v1395, 0.0
    %v1404 = vadd.f32 %v1402, %v1403
    %v1405 = vsel %vm166, %v1397, 0.0
    %v1406 = vadd.f32 %v1404, %v1405
    %v1407 = vsel %vm166, %v1399, 0.0
    %v1408 = vadd.f32 %v1406, %v1407
    %v1409 = vlog2.pop %v1408
    %v1410 = vmul.f32 %v1409, 0.6931472
    %v1411 = vadd.f32 %v1384, %v1410
    %v1412 = vmul.f32 %v1411, %v1297
    %v1413 = vsub.f32 1.0, %v1202
    %v1415 = vlaneseq
    %v1416 = vshrl.u32 %v1415, 7
    %v1417 = vsub.s32 0, %v1416
    %v1418 = vrot.slane %v1413, %v1417
    %v1420 = vmul.f32 %v1198, %v1418
    %v1421 = vadd.f32 %v1412, %v1420
    %s1422 = scalar_lea.vmem %s0, 56
    %v1423 = vld [vmem:[%s1422] sm:$0x1f]
    %s1424 = scalar_lea.vmem %s2, 7
    %v1425 = vld [vmem:[%s1424] sm:$0x1]
    %s1426 = scalar_lea.vmem %s1, 7
    %v1427 = vld [vmem:[%s1426] sm:$0x1]
    %v1428 = vlaneseq
    %v1429 = vshrl.u32 %v1428, 7
    %v1430 = vsub.s32 0, %v1429
    %v1431 = vrot.slane %v1427, %v1430
    %vm1432 = vcmp.eq.s32.totalorder %v32, %v1431
    %v1433 = vsel %vm1432, 1, 0
    %v1434 = vcvt.s32.f32 %v1433
    %v1436 = vcombine.high %v1211, %v1211
    %v1438 = vunpack.c.l.s4 1966171168
    %v1439 = vunpack.c.0.s8 %v1438
    %v1440 = vlaneseq
    %v1441 = vshrl.u32 %v1440, 7
    %v1442 = vsub.s32 %v1439, %v1441
    %v1443 = vrot.slane %v1211, %v1442
    %v1445 = vunpack.c.l.s4 1966171168
    %v1446 = vunpack.c.0.s8 %v1445
    %v1447 = vlaneseq
    %v1448 = vshrl.u32 %v1447, 7
    %v1449 = vsub.s32 %v1446, %v1448
    %v1450 = vrot.slane %v1436, %v1449
    %v1451 = vcombine.high %v1443, %v1443
    %v1453 = vunpack.c.l.s4 1966171168
    %v1454 = vunpack.c.0.s8 %v1453
    %v1455 = vlaneseq
    %v1456 = vshrl.u32 %v1455, 7
    %v1457 = vsub.s32 %v1454, %v1456
    %v1458 = vrot.slane %v1443, %v1457
    %v1460 = vunpack.c.l.s4 1966171168
    %v1461 = vunpack.c.0.s8 %v1460
    %v1462 = vlaneseq
    %v1463 = vshrl.u32 %v1462, 7
    %v1464 = vsub.s32 %v1461, %v1463
    %v1465 = vrot.slane %v1450, %v1464
    %v1467 = vunpack.c.l.s4 1966171168
    %v1468 = vunpack.c.0.s8 %v1467
    %v1469 = vlaneseq
    %v1470 = vshrl.u32 %v1469, 7
    %v1471 = vsub.s32 %v1468, %v1470
    %v1472 = vrot.slane %v1451, %v1471
    %v1473 = vcombine.high %v1458, %v1458
    %v1474 = vcombine.high %v1472, %v1472
    %v1475 = vlaneseq
    %v1476 = vshrl.u32 %v1475, 7
    %v1477 = vsub.s32 0, %v1476
    %v1478 = vrot.slane %v1458, %v1477
    %v1479 = vlaneseq
    %v1480 = vshrl.u32 %v1479, 7
    %v1481 = vsub.s32 0, %v1480
    %v1482 = vrot.slane %v1472, %v1481
    %v1483 = vlaneseq
    %v1484 = vshrl.u32 %v1483, 7
    %v1485 = vsub.s32 0, %v1484
    %v1486 = vrot.slane %v1473, %v1485
    %v1487 = vlaneseq
    %v1488 = vshrl.u32 %v1487, 7
    %v1489 = vsub.s32 0, %v1488
    %v1490 = vrot.slane %v1474, %v1489
    %v1491 = vlaneseq
    %v1492 = vshrl.u32 %v1491, 7
    %v1493 = vsub.s32 0, %v1492
    %v1494 = vrot.slane %v1465, %v1493
    %v1500 = vmul.f32 %v114, %v1478
    %v1501 = vmul.f32 %v119, %v1482
    %v1502 = vmul.f32 %v124, %v1486
    %v1503 = vmul.f32 %v129, %v1490
    %v1504 = vmul.f32 %v134, %v1494
    %v1505 = vsel %vm166, %v1500, 0.0
    %v1506 = vsel %vm166, %v1501, 0.0
    %v1507 = vadd.f32 %v1505, %v1506
    %v1508 = vsel %vm166, %v1502, 0.0
    %v1509 = vadd.f32 %v1507, %v1508
    %v1510 = vsel %vm166, %v1503, 0.0
    %v1511 = vadd.f32 %v1509, %v1510
    %v1512 = vsel %vm166, %v1504, 0.0
    %v1513 = vadd.f32 %v1511, %v1512
    %v1514 = vadd.f32 %v1423, %v1513
    %v1515 = vmul.f32 %v1434, %v1514
    %v1517 = vlaneseq
    %v1518 = vshrl.u32 %v1517, 7
    %v1519 = vsub.s32 0, %v1518
    %v1520 = vrot.slane %v1425, %v1519
    %v1522 = vmul.f32 %v1515, %v1520
    %v1523 = vadd.f32 %v1300, %v1522
    %v1525 = vcombine.high %v1421, %v1421
    %v1527 = vunpack.c.l.s4 1966171168
    %v1528 = vunpack.c.0.s8 %v1527
    %v1529 = vlaneseq
    %v1530 = vshrl.u32 %v1529, 7
    %v1531 = vsub.s32 %v1528, %v1530
    %v1532 = vrot.slane %v1421, %v1531
    %v1534 = vunpack.c.l.s4 1966171168
    %v1535 = vunpack.c.0.s8 %v1534
    %v1536 = vlaneseq
    %v1537 = vshrl.u32 %v1536, 7
    %v1538 = vsub.s32 %v1535, %v1537
    %v1539 = vrot.slane %v1525, %v1538
    %v1540 = vcombine.high %v1532, %v1532
    %v1542 = vunpack.c.l.s4 1966171168
    %v1543 = vunpack.c.0.s8 %v1542
    %v1544 = vlaneseq
    %v1545 = vshrl.u32 %v1544, 7
    %v1546 = vsub.s32 %v1543, %v1545
    %v1547 = vrot.slane %v1532, %v1546
    %v1549 = vunpack.c.l.s4 1966171168
    %v1550 = vunpack.c.0.s8 %v1549
    %v1551 = vlaneseq
    %v1552 = vshrl.u32 %v1551, 7
    %v1553 = vsub.s32 %v1550, %v1552
    %v1554 = vrot.slane %v1539, %v1553
    %v1556 = vunpack.c.l.s4 1966171168
    %v1557 = vunpack.c.0.s8 %v1556
    %v1558 = vlaneseq
    %v1559 = vshrl.u32 %v1558, 7
    %v1560 = vsub.s32 %v1557, %v1559
    %v1561 = vrot.slane %v1540, %v1560
    %v1562 = vcombine.high %v1547, %v1547
    %v1563 = vcombine.high %v1561, %v1561
    %v1564 = vlaneseq
    %v1565 = vshrl.u32 %v1564, 7
    %v1566 = vsub.s32 0, %v1565
    %v1567 = vrot.slane %v1547, %v1566
    %v1568 = vlaneseq
    %v1569 = vshrl.u32 %v1568, 7
    %v1570 = vsub.s32 0, %v1569
    %v1571 = vrot.slane %v1561, %v1570
    %v1572 = vlaneseq
    %v1573 = vshrl.u32 %v1572, 7
    %v1574 = vsub.s32 0, %v1573
    %v1575 = vrot.slane %v1562, %v1574
    %v1576 = vlaneseq
    %v1577 = vshrl.u32 %v1576, 7
    %v1578 = vsub.s32 0, %v1577
    %v1579 = vrot.slane %v1563, %v1578
    %v1580 = vlaneseq
    %v1581 = vshrl.u32 %v1580, 7
    %v1582 = vsub.s32 0, %v1581
    %v1583 = vrot.slane %v1554, %v1582
    %v1589 = vadd.f32 %v1567, %v1423
    %v1590 = vadd.f32 %v1571, %v1423
    %v1591 = vadd.f32 %v1575, %v1423
    %v1592 = vadd.f32 %v1579, %v1423
    %v1593 = vadd.f32 %v1583, %v1423
    %v1594 = vadd.f32 %v1589, %v114
    %v1595 = vadd.f32 %v1590, %v119
    %v1596 = vadd.f32 %v1591, %v124
    %v1597 = vadd.f32 %v1592, %v129
    %v1598 = vadd.f32 %v1593, %v134
    %v1599 = vsel %vm166, %v1594, -inf
    %v1600 = vsel %vm166, %v1595, -inf
    %v1601 = vsel %vm166, %v1596, -inf
    %v1602 = vsel %vm166, %v1597, -inf
    %v1603 = vsel %vm166, %v1598, -inf
    %v1604 = vmax.f32 %v1599, %v1603
    %v1605 = vmax.f32 %v1604, %v1600
    %v1606 = vmax.f32 %v1601, %v1602
    %v1607 = vmax.f32 %v1605, %v1606
    %v1608 = vsub.f32 %v1594, %v1607
    %v1609 = vsub.f32 %v1595, %v1607
    %v1610 = vsub.f32 %v1596, %v1607
    %v1611 = vsub.f32 %v1597, %v1607
    %v1612 = vsub.f32 %v1598, %v1607
    %v1613 = vmul.f32 %v1608, 1.442695
    %v1614 = vpow.pop %v1613
    %v1615 = vmul.f32 %v1609, 1.442695
    %v1616 = vpow.pop %v1615
    %v1617 = vmul.f32 %v1610, 1.442695
    %v1618 = vpow.pop %v1617
    %v1619 = vmul.f32 %v1611, 1.442695
    %v1620 = vpow.pop %v1619
    %v1621 = vmul.f32 %v1612, 1.442695
    %v1622 = vpow.pop %v1621
    %v1623 = vsel %vm166, %v1614, 0.0
    %v1624 = vsel %vm166, %v1616, 0.0
    %v1625 = vadd.f32 %v1623, %v1624
    %v1626 = vsel %vm166, %v1618, 0.0
    %v1627 = vadd.f32 %v1625, %v1626
    %v1628 = vsel %vm166, %v1620, 0.0
    %v1629 = vadd.f32 %v1627, %v1628
    %v1630 = vsel %vm166, %v1622, 0.0
    %v1631 = vadd.f32 %v1629, %v1630
    %v1632 = vlog2.pop %v1631
    %v1633 = vmul.f32 %v1632, 0.6931472
    %v1634 = vadd.f32 %v1607, %v1633
    %v1635 = vmul.f32 %v1634, %v1520
    %v1636 = vsub.f32 1.0, %v1425
    %v1638 = vlaneseq
    %v1639 = vshrl.u32 %v1638, 7
    %v1640 = vsub.s32 0, %v1639
    %v1641 = vrot.slane %v1636, %v1640
    %v1643 = vmul.f32 %v1421, %v1641
    %v1644 = vadd.f32 %v1635, %v1643
    %v1645 = vld [vmem:[%s1] sm:$0x1]
    %v1646 = vld [vmem:[%s1 + $0x1] sm:$0x1]
    %v1647 = vld [vmem:[%s1 + $0x2] sm:$0x1]
    %v1648 = vld [vmem:[%s1 + $0x3] sm:$0x1]
    %v1649 = vld [vmem:[%s1 + $0x4] sm:$0x1]
    %v1650 = vld [vmem:[%s1 + $0x5] sm:$0x1]
    %v1651 = vld [vmem:[%s1 + $0x6] sm:$0x1]
    %v1652 = vld [vmem:[%s1 + $0x7] sm:$0x1]
    %v1653 = vld [vmem:[%s2] sm:$0x1]
    %v1654 = vld [vmem:[%s2 + $0x1] sm:$0x1]
    %v1655 = vld [vmem:[%s2 + $0x2] sm:$0x1]
    %v1656 = vld [vmem:[%s2 + $0x3] sm:$0x1]
    %v1657 = vld [vmem:[%s2 + $0x4] sm:$0x1]
    %v1658 = vld [vmem:[%s2 + $0x5] sm:$0x1]
    %v1659 = vld [vmem:[%s2 + $0x6] sm:$0x1]
    %v1660 = vld [vmem:[%s2 + $0x7] sm:$0x1]
    %v1669 = vcombine.low %v1653, %v1654
    %v1670 = vcombine.low %v1655, %v1656
    %v1671 = vcombine.low %v1657, %v1658
    %v1672 = vcombine.low %v1659, %v1660
    %v1674 = vunpack.c.l.s4 1966171168
    %v1675 = vunpack.c.0.s8 %v1674
    %v1676 = vlaneseq
    %v1677 = vshrl.u32 %v1676, 7
    %v1678 = vsub.s32 %v1675, %v1677
    %v1679 = vrot.slane %v1669, %v1678
    %v1681 = vunpack.c.l.s4 1966171168
    %v1682 = vunpack.c.0.s8 %v1681
    %v1683 = vlaneseq
    %v1684 = vshrl.u32 %v1683, 7
    %v1685 = vsub.s32 %v1682, %v1684
    %v1686 = vrot.slane %v1670, %v1685
    %v1688 = vunpack.c.l.s4 1966171168
    %v1689 = vunpack.c.0.s8 %v1688
    %v1690 = vlaneseq
    %v1691 = vshrl.u32 %v1690, 7
    %v1692 = vsub.s32 %v1689, %v1691
    %v1693 = vrot.slane %v1671, %v1692
    %v1695 = vunpack.c.l.s4 1966171168
    %v1696 = vunpack.c.0.s8 %v1695
    %v1697 = vlaneseq
    %v1698 = vshrl.u32 %v1697, 7
    %v1699 = vsub.s32 %v1696, %v1698
    %v1700 = vrot.slane %v1672, %v1699
    %v1701 = vcombine.low %v1679, %v1686
    %v1702 = vcombine.low %v1693, %v1700
    %v1704 = vunpack.c.l.s4 1966171168
    %v1705 = vunpack.c.0.s8 %v1704
    %v1706 = vlaneseq
    %v1707 = vshrl.u32 %v1706, 7
    %v1708 = vsub.s32 %v1705, %v1707
    %v1709 = vrot.slane %v1701, %v1708
    %v1711 = vunpack.c.l.s4 1966171168
    %v1712 = vunpack.c.0.s8 %v1711
    %v1713 = vlaneseq
    %v1714 = vshrl.u32 %v1713, 7
    %v1715 = vsub.s32 %v1712, %v1714
    %v1716 = vrot.slane %v1702, %v1715
    %v1717 = vcombine.low %v1709, %v1716
    %vm1719 = vcmask 64512
    %v1720 = vsel %vm1719, %v1717, 0.0
    %v1721 = vrot.slane %v1720, 4
    %v1722 = vadd.f32 %v1720, %v1721
    %v1723 = vrot.slane %v1722, 2
    %v1724 = vadd.f32 %v1722, %v1723
    %v1725 = vrot.slane %v1724, 1
    %v1726 = vadd.f32 %v1724, %v1725
    %v1727 = vcvt.f32.s32.to.zero.pseudo %v1726
    %v1728 = vsub.s32 %v1727, 1
    %v1729 = vlaneseq
    %v1730 = vshrl.u32 %v1729, 7
    %v1731 = vsub.s32 0, %v1730
    %v1732 = vrot.slane %v1728, %v1731
    %vm1733 = vcmp.eq.s32.totalorder %v32, %v1732
    %v1734 = vsel %vm1733, 1, 0
    %v1735 = vcombine.low %v1645, %v1646
    %v1736 = vcombine.low %v1647, %v1648
    %v1737 = vcombine.low %v1649, %v1650
    %v1738 = vcombine.low %v1651, %v1652
    %v1740 = vunpack.c.l.s4 1966171168
    %v1741 = vunpack.c.0.s8 %v1740
    %v1742 = vlaneseq
    %v1743 = vshrl.u32 %v1742, 7
    %v1744 = vsub.s32 %v1741, %v1743
    %v1745 = vrot.slane %v1735, %v1744
    %v1747 = vunpack.c.l.s4 1966171168
    %v1748 = vunpack.c.0.s8 %v1747
    %v1749 = vlaneseq
    %v1750 = vshrl.u32 %v1749, 7
    %v1751 = vsub.s32 %v1748, %v1750
    %v1752 = vrot.slane %v1736, %v1751
    %v1754 = vunpack.c.l.s4 1966171168
    %v1755 = vunpack.c.0.s8 %v1754
    %v1756 = vlaneseq
    %v1757 = vshrl.u32 %v1756, 7
    %v1758 = vsub.s32 %v1755, %v1757
    %v1759 = vrot.slane %v1737, %v1758
    %v1761 = vunpack.c.l.s4 1966171168
    %v1762 = vunpack.c.0.s8 %v1761
    %v1763 = vlaneseq
    %v1764 = vshrl.u32 %v1763, 7
    %v1765 = vsub.s32 %v1762, %v1764
    %v1766 = vrot.slane %v1738, %v1765
    %v1767 = vcombine.low %v1745, %v1752
    %v1768 = vcombine.low %v1759, %v1766
    %v1770 = vunpack.c.l.s4 1966171168
    %v1771 = vunpack.c.0.s8 %v1770
    %v1772 = vlaneseq
    %v1773 = vshrl.u32 %v1772, 7
    %v1774 = vsub.s32 %v1771, %v1773
    %v1775 = vrot.slane %v1767, %v1774
    %v1777 = vunpack.c.l.s4 1966171168
    %v1778 = vunpack.c.0.s8 %v1777
    %v1779 = vlaneseq
    %v1780 = vshrl.u32 %v1779, 7
    %v1781 = vsub.s32 %v1778, %v1780
    %v1782 = vrot.slane %v1768, %v1781
    %v1783 = vcombine.low %v1775, %v1782
    %v1784 = vmul.u32 %v1734, %v1783
    %v1785 = vsel %vm1719, %v1784, 0
    %v1786 = vrot.slane %v1785, 4
    %v1787 = vadd.s32 %v1785, %v1786
    %v1788 = vrot.slane %v1787, 2
    %v1789 = vadd.s32 %v1787, %v1788
    %v1790 = vrot.slane %v1789, 1
    %v1791 = vadd.s32 %v1789, %v1790
    %vm1792 = vcmp.eq.s32.totalorder %v32, %v1791
    %v1793 = vsel %vm1792, 1, 0
    %v1794 = vcvt.s32.f32 %v1793
    %1796 = vset.pattern.permute.xlu0 0
    %1797 = vperm.xlu0 %1796, %v25
    %v1798 = vpop.permute.xlu0 %1797
    %v1800 = vmul.f32 %v1794, %v1798
    %v1801 = vadd.f32 %v1523, %v1800
    %v1802 = vsel %vm166, %v1801, 0.0
    %v1803 = vrot.slane %v1802, 4
    %v1804 = vadd.f32 %v1802, %v1803
    %v1805 = vrot.slane %v1804, 2
    %v1806 = vadd.f32 %v1804, %v1805
    %v1807 = vrot.slane %v1806, 1
    %v1808 = vadd.f32 %v1806, %v1807
    %v1809 = vadd.f32 %v1644, %v1798
    %v1810 = vsel %vm166, %v1809, -inf
    %v1811 = vrot.slane %v1810, 4
    %v1812 = vmax.f32 %v1810, %v1811
    %v1813 = vrot.slane %v1812, 2
    %v1814 = vmax.f32 %v1812, %v1813
    %v1815 = vrot.slane %v1814, 1
    %v1816 = vmax.f32 %v1814, %v1815
    %v1817 = vsub.f32 %v1809, %v1816
    %v1818 = vmul.f32 %v1817, 1.442695
    %v1819 = vpow.pop %v1818
    %v1820 = vsel %vm166, %v1819, 0.0
    %v1821 = vrot.slane %v1820, 4
    %v1822 = vadd.f32 %v1820, %v1821
    %v1823 = vrot.slane %v1822, 2
    %v1824 = vadd.f32 %v1822, %v1823
    %v1825 = vrot.slane %v1824, 1
    %v1826 = vadd.f32 %v1824, %v1825
    %v1827 = vlog2.pop %v1826
    %v1828 = vmul.f32 %v1827, 0.6931472
    %v1829 = vadd.f32 %v1816, %v1828
    %v1830 = vsub.f32 %v1808, %v1829
    %v1831 = vsel %vm1719, %v1830, 0.0
    %1832 = vadd.xlane.f32.xlu0 %v1831
    %v1833 = vpop.xlane.xlu0 %1832
    %s1834 = vtos %v1833
    %s1835 = scalar_lea.smem [#allocation2], 0
    %1836 = sst [smem:[%s1835]] %s1834
    // Predicated region
    $region26: #{tpu_custom_call.1} parent=1 // pred_check
      _
    $region27: #{tpu_custom_call.1} parent=1 // pred_check_branch
      %1838 = sbr.rel (0) target = $region29
    $region28: #{tpu_custom_call.1} parent=1 // pred_region
      %s1840 = ssub.s32 16, 16
      %1841 = vsyncadd [#allocation3], %s1840
      %1844 = dma.smem_to_hbm [#allocation2], 16, %s6, [#allocation3]
    $region29: #{tpu_custom_call.1} parent=1 // pred_fallthru
      _
    // Predicated region
    $region30: #{tpu_custom_call.1} parent=1 // pred_check
      _
    $region31: #{tpu_custom_call.1} parent=1 // pred_check_branch
      %1846 = sbr.rel (0) target = $region33
    $region32: #{tpu_custom_call.1} parent=1 // pred_region
      %1847 = dma.done [#allocation3], 16
    $region33: #{tpu_custom_call.1} parent=1 // pred_fallthru
      _
    %1848 = sfence
    %1849 = vsyncpa [#allocation3], 1

</llo_original>
